<compile_context>
chip_gen: v7x
topology: tpu7x:2x2x1
jax: 0.10.0
libtpu: 0.0.40
codegen_flags: <defaults>
</compile_context>

<pallas_src>
import functools

import jax
import jax.numpy as jnp
from jax.experimental import pallas as pl
from jax.experimental.pallas import tpu as pltpu


# ---------------------------------------------------------------------------
# Pallas kernel: GCN aggregation  out = act(A_norm @ Z + b)
#   a_ref : (tm, tk)    bf16  streamed adjacency block
#   z_ref : (n_pad, fo) bf16  VMEM-resident pre-transformed features
#   b_ref : (1, fo)     f32   VMEM-resident bias
# ---------------------------------------------------------------------------
def _gcn_agg_kernel(a_ref, z_ref, b_ref, out_ref, acc_ref, *, relu, tk):
    k = pl.program_id(1)

    @pl.when(k == 0)
    def _():
        acc_ref[...] = jnp.zeros_like(acc_ref)

    # Slice the resident Z for this k-tile (no per-step DMA of Z).
    start = pl.multiple_of(k * tk, tk)
    zk = z_ref[pl.ds(start, tk), :]
    acc_ref[...] += jnp.dot(a_ref[...], zk, preferred_element_type=jnp.float32)

    @pl.when(k == pl.num_programs(1) - 1)
    def _():
        h = acc_ref[...] + b_ref[...]
        if relu:
            h = jnp.maximum(h, 0.0)
        out_ref[...] = h.astype(out_ref.dtype)


def _round_up(x, m):
    return (x + m - 1) // m * m


def _choose_tiles(n):
    """Pad node count and pick adjacency tiles.

    Large graphs are padded to a multiple of 512 so the A tile never falls
    back to 128 (measured roofline: 128-tile ~29%, 512-tile ~85%).  Small
    graphs use a single full tile.
    """
    n_pad = _round_up(n, 128)
    if n_pad >= 512:
        n_pad = _round_up(n_pad, 512)
        tm, tk = 512, 512
    else:
        tm = tk = n_pad
    return n_pad, tm, tk


def _gcn_aggregate(adj, z, b, *, relu, out_dtype, tm, tk):
    """One tiled aggregation layer. adj: [Np,Np] bf16, z: [Np,fo] bf16, b: [1,fo] f32."""
    n_pad = adj.shape[0]
    fo = z.shape[1]                       # already padded to a multiple of 128
    grid = (n_pad // tm, n_pad // tk)
    out_itemsize = jnp.dtype(out_dtype).itemsize

    # Deeper buffering on the only large stream (A) when there are enough
    # grid steps to benefit; otherwise keep the default double buffering.
    a_bufs = 3 if grid[0] * grid[1] >= 3 else 2
    if a_bufs > 2:
        a_spec = pl.BlockSpec((tm, tk), lambda i, k: (i, k),
                              pipeline_mode=pl.Buffered(a_bufs))
    else:
        a_spec = pl.BlockSpec((tm, tk), lambda i, k: (i, k))

    # --- VMEM budget (recomputed for the new shapes) ---
    vmem_bytes = (a_bufs * tm * tk * 2          # A blocks (bf16)
                  + 2 * n_pad * fo * 2          # Z resident (slack: counted 2x)
                  + 2 * fo * 4                  # bias
                  + 2 * tm * fo * out_itemsize  # output double buffer
                  + tm * fo * 4)                # f32 accumulator scratch
    vmem_limit = int(min(64 * 1024 * 1024,
                         max(8 * 1024 * 1024, 2 * vmem_bytes)))

    # --- advisory cost estimate (A stream dominates) ---
    flops = 2 * n_pad * n_pad * fo
    bytes_accessed = (n_pad * n_pad * 2            # A (bf16), read once
                      + n_pad * fo * 2             # Z, read once (resident)
                      + fo * 4                     # bias
                      + n_pad * fo * out_itemsize) # output

    return pl.pallas_call(
        functools.partial(_gcn_agg_kernel, relu=relu, tk=tk),
        out_shape=jax.ShapeDtypeStruct((n_pad, fo), out_dtype),
        grid_spec=pltpu.PrefetchScalarGridSpec(
            num_scalar_prefetch=0,
            grid=grid,
            in_specs=[
                a_spec,                                        # A (streamed)
                pl.BlockSpec((n_pad, fo), lambda i, k: (0, 0)),  # Z (resident)
                pl.BlockSpec((1, fo), lambda i, k: (0, 0)),      # b (resident)
            ],
            out_specs=pl.BlockSpec((tm, fo), lambda i, k: (i, 0)),
            scratch_shapes=[pltpu.VMEM((tm, fo), jnp.float32)],
        ),
        compiler_params=pltpu.CompilerParams(
            dimension_semantics=("parallel", "arbitrary"),
            vmem_limit_bytes=vmem_limit,
        ),
        cost_estimate=pl.CostEstimate(
            flops=flops, transcendentals=0, bytes_accessed=bytes_accessed),
    )(adj, z, b)


# ---------------------------------------------------------------------------
# Glue (plain JAX): normalized dense adjacency, padding, parameter init
# ---------------------------------------------------------------------------
def build_norm_adj(edge_index, num_nodes, n_pad=None, dtype=jnp.float32):
    """Dense symmetric-normalized adjacency built directly at the padded size,
    gcn_norm semantics: duplicate edges are counted, self loops only added
    where missing (and only for real nodes)."""
    if n_pad is None:
        n_pad = num_nodes
    src = edge_index[0]
    dst = edge_index[1]
    a = jnp.zeros((n_pad, n_pad), jnp.float32)
    a = a.at[dst, src].add(1.0)                    # message flows src -> dst
    idx = jnp.arange(n_pad)
    diag = a[idx, idx]
    need_loop = (diag == 0.0) & (idx < num_nodes)  # add_remaining_self_loops
    a = a.at[idx, idx].add(jnp.where(need_loop, 1.0, 0.0))
    deg = a.sum(axis=1)
    d_inv_sqrt = jnp.where(deg > 0, jax.lax.rsqrt(deg), 0.0)
    return (d_inv_sqrt[:, None] * a * d_inv_sqrt[None, :]).astype(dtype)


def _pad2d(a, rows, cols):
    return jnp.pad(a, ((0, rows - a.shape[0]), (0, cols - a.shape[1])))


def variational_gnn_encoder(x, edge_index, params):
    """Returns (mu, logstd), each [N, out_channels]."""
    n = x.shape[0]
    w1, b1, w2, b2 = params
    in_channels = w1.shape[0]
    hidden = w1.shape[1]
    f2 = w2.shape[1]                 # = 2 * out_channels
    out_channels = f2 // 2

    # Lane-pad output feature dims to multiples of 128 (zero columns) so the
    # kernel emits lane-dense, unmasked stores; padding is sliced off below.
    fo1 = _round_up(hidden, 128)
    fo2 = _round_up(f2, 128)
    w1p = _pad2d(w1, in_channels, fo1)            # [in, fo1]
    b1p = _pad2d(b1, 1, fo1)                      # [1, fo1]
    w2p = _pad2d(w2, fo1, fo2)                    # [fo1, fo2] (zero rows/cols)
    b2p = _pad2d(b2, 1, fo2)                      # [1, fo2]

    # Padded, normalized adjacency built once, cast once to bf16 (fused under jit).
    n_pad, tm, tk = _choose_tiles(n)
    adj = build_norm_adj(edge_index, n, n_pad, jnp.bfloat16)

    x_p = jnp.pad(x, ((0, n_pad - n), (0, 0)))

    # Layer 1: feature transform hoisted (tiny matmul, f32 acc, one bf16 cast),
    # then Pallas aggregation  h1 = relu(A @ z1 + b1).
    z1 = jnp.dot(x_p, w1p, preferred_element_type=jnp.float32).astype(jnp.bfloat16)
    h1 = _gcn_aggregate(adj, z1, b1p, relu=True, out_dtype=jnp.bfloat16,
                        tm=tm, tk=tk)

    # Layer 2: same structure, final output in f32.
    z2 = jnp.dot(h1, w2p.astype(jnp.bfloat16),
                 preferred_element_type=jnp.float32).astype(jnp.bfloat16)
    h2 = _gcn_aggregate(adj, z2, b2p, relu=False, out_dtype=jnp.float32,
                        tm=tm, tk=tk)

    h2 = h2[:n, :f2]
    # torch.chunk(h, 2, dim=1) done outside the kernel (keeps stores lane-dense).
    return h2[:, :out_channels], h2[:, out_channels:]


def init_params(key, in_channels, out_channels):
    """Deterministic glorot weights, zero biases (matches GCNConv init scheme)."""
    hidden = out_channels
    k1, k2 = jax.random.split(key)

    def glorot(k, fan_in, fan_out):
        lim = jnp.sqrt(6.0 / (fan_in + fan_out))
        return jax.random.uniform(k, (fan_in, fan_out), jnp.float32, -lim, lim)

    w1 = glorot(k1, in_channels, hidden)
    b1 = jnp.zeros((1, hidden), jnp.float32)
    w2 = glorot(k2, hidden, 2 * out_channels)
    b2 = jnp.zeros((1, 2 * out_channels), jnp.float32)
    return w1, b1, w2, b2


def _reference(x, edge_index, params):
    w1, b1, w2, b2 = params
    a = build_norm_adj(edge_index, x.shape[0])
    h1 = jnp.maximum(a @ (x @ w1) + b1, 0.0)
    h2 = a @ (h1 @ w2) + b2
    oc = w2.shape[1] // 2
    return h2[:, :oc], h2[:, oc:]


if __name__ == "__main__":
    key = jax.random.PRNGKey(0)
    k_x, k_e, k_p = jax.random.split(key, 3)

    num_nodes = 256
    in_channels = 8
    out_channels = 16
    num_edges = 1024

    x = jax.random.normal(k_x, (num_nodes, in_channels), jnp.float32)
    # random directed edges; symmetrize like a typical undirected GCN graph
    e = jax.random.randint(k_e, (2, num_edges), 0, num_nodes, jnp.int32)
    edge_index = jnp.concatenate([e, e[::-1]], axis=1)

    params = init_params(k_p, in_channels, out_channels)

    encoder = jax.jit(variational_gnn_encoder)
    mu, logstd = encoder(x, edge_index, params)
    jax.block_until_ready((mu, logstd))

    assert mu.shape == (num_nodes, out_channels)
    assert logstd.shape == (num_nodes, out_channels)

    # Loose tolerance: kernel path uses bf16 adjacency / Z with f32 accumulation.
    mu_ref, logstd_ref = _reference(x, edge_index, params)
    assert jnp.allclose(mu, mu_ref, rtol=5e-2, atol=2e-2)
    assert jnp.allclose(logstd, logstd_ref, rtol=5e-2, atol=2e-2)

    print("KERNEL_OK")
</pallas_src>

<mosaic_0001>
module attributes {stable_mosaic.version = 11 : i64} {
  func.func private @main(%arg0: i32) attributes {dimension_semantics = [#tpu.dimension_semantics<core_parallel>], iteration_bounds = array<i64: 2>, tpu.core_type = #tpu.core_type<sc_scalar_subcore>, window_params = []} {
    return
  }
}

module attributes {stable_mosaic.version = 11 : i64} {
  func.func private @main(%arg0: i32) attributes {dimension_semantics = [#tpu.dimension_semantics<core_parallel>], iteration_bounds = array<i64: 2>, tpu.core_type = #tpu.core_type<sc_scalar_subcore>, window_params = []} {
    return
  }
}

module attributes {stable_mosaic.version = 11 : i64} {
  func.func @_gcn_agg_kernel(%arg0: i32, %arg1: i32, %arg2: memref<256x256xbf16, #tpu.memory_space<vmem>>, %arg3: memref<256x128xbf16, #tpu.memory_space<vmem>>, %arg4: memref<1x128xf32, #tpu.memory_space<vmem>>, %arg5: memref<256x128xbf16, #tpu.memory_space<vmem>>, %arg6: memref<256x128xf32, #tpu.memory_space<vmem>>) attributes {dimension_semantics = [#tpu.dimension_semantics<parallel>, #tpu.dimension_semantics<arbitrary>], iteration_bounds = array<i64: 1, 1>, scalar_prefetch = 0 : i64, scratch_operands = 1 : i64, tpu.core_type = #tpu.core_type<tc>, window_params = [{transform_indices = @transform_0, window_bounds = array<i64: 256, 256>}, {pipeline_mode = #tpu.pipeline_mode<synchronous>, transform_indices = @transform_1, window_bounds = array<i64: 256, 128>}, {pipeline_mode = #tpu.pipeline_mode<synchronous>, transform_indices = @transform_2, window_bounds = array<i64: 1, 128>}, {transform_indices = @transform_3, window_bounds = array<i64: 256, 128>}]} {
    %c0_i32 = arith.constant 0 : i32
    %0 = arith.cmpi eq, %arg1, %c0_i32 : i32
    %1 = arith.extui %0 : i1 to i32
    %c0_i32_0 = arith.constant 0 : i32
    %2 = arith.cmpi ne, %1, %c0_i32_0 : i32
    scf.if %2 {
      %cst_9 = arith.constant 0.000000e+00 : f32
      %15 = vector.broadcast %cst_9 : f32 to vector<256x128xf32>
      %c0_10 = arith.constant 0 : index
      %c0_11 = arith.constant 0 : index
      %16 = vector.load %arg6[%c0_10, %c0_11] : memref<256x128xf32, #tpu.memory_space<vmem>>, vector<256x128xf32>
      tpu.vector_store %arg6[%c0_10, %c0_11], %15 {strides = array<i32>} : memref<256x128xf32, #tpu.memory_space<vmem>>, vector<256x128xf32>,
    } else {
    }
    %c256_i32 = arith.constant 256 : i32
    %3 = arith.muli %arg1, %c256_i32 : i32
    %4 = tpu.assume_multiple %3, 256 : i32
    %5 = arith.index_cast %4 : i32 to index
    %c0 = arith.constant 0 : index
    %6 = vector.load %arg3[%5, %c0] : memref<256x128xbf16, #tpu.memory_space<vmem>>, vector<256x128xbf16>
    %c0_1 = arith.constant 0 : index
    %c0_2 = arith.constant 0 : index
    %7 = vector.load %arg6[%c0_1, %c0_2] : memref<256x128xf32, #tpu.memory_space<vmem>>, vector<256x128xf32>
    %c0_3 = arith.constant 0 : index
    %c0_4 = arith.constant 0 : index
    %8 = vector.load %arg2[%c0_3, %c0_4] : memref<256x256xbf16, #tpu.memory_space<vmem>>, vector<256x256xbf16>
    %cst = arith.constant dense<0.000000e+00> : vector<256x128xf32>
    %9 = tpu.matmul %8, %6, %cst {dimension_numbers = #tpu.dot_dimension_numbers<[1], [0], [0], [1], [0, 0, 1, 1], [], []>} : vector<256x256xbf16>, vector<256x128xbf16>, vector<256x128xf32> -> vector<256x128xf32>
    %10 = arith.addf %7, %9 : vector<256x128xf32>
    %c0_5 = arith.constant 0 : index
    %c0_6 = arith.constant 0 : index
    %11 = vector.load %arg6[%c0_5, %c0_6] : memref<256x128xf32, #tpu.memory_space<vmem>>, vector<256x128xf32>
    tpu.vector_store %arg6[%c0_5, %c0_6], %10 {strides = array<i32>} : memref<256x128xf32, #tpu.memory_space<vmem>>, vector<256x128xf32>,
    %c0_i32_7 = arith.constant 0 : i32
    %12 = arith.cmpi eq, %arg1, %c0_i32_7 : i32
    %13 = arith.extui %12 : i1 to i32
    %c0_i32_8 = arith.constant 0 : i32
    %14 = arith.cmpi ne, %13, %c0_i32_8 : i32
    scf.if %14 {
      %c0_9 = arith.constant 0 : index
      %c0_10 = arith.constant 0 : index
      %15 = vector.load %arg6[%c0_9, %c0_10] : memref<256x128xf32, #tpu.memory_space<vmem>>, vector<256x128xf32>
      %c0_11 = arith.constant 0 : index
      %c0_12 = arith.constant 0 : index
      %16 = vector.load %arg4[%c0_11, %c0_12] : memref<1x128xf32, #tpu.memory_space<vmem>>, vector<1x128xf32>
      %17 = vector.broadcast %16 : vector<1x128xf32> to vector<256x128xf32>
      %18 = arith.addf %15, %17 : vector<256x128xf32>
      %cst_13 = arith.constant 0.000000e+00 : f32
      %19 = vector.broadcast %cst_13 : f32 to vector<256x128xf32>
      %20 = arith.maximumf %18, %19 : vector<256x128xf32>
      %21 = arith.truncf %20 : vector<256x128xf32> to vector<256x128xbf16>
      %c0_14 = arith.constant 0 : index
      %c0_15 = arith.constant 0 : index
      %22 = vector.load %arg5[%c0_14, %c0_15] : memref<256x128xbf16, #tpu.memory_space<vmem>>, vector<256x128xbf16>
      tpu.vector_store %arg5[%c0_14, %c0_15], %21 {strides = array<i32>} : memref<256x128xbf16, #tpu.memory_space<vmem>>, vector<256x128xbf16>,
    } else {
    }
    return
  }
  func.func @transform_0(%arg0: i32, %arg1: i32) -> (i32, i32) {
    %c0_i32 = arith.constant 0 : i32
    return %arg0, %arg1 : i32, i32
  }
  func.func @transform_1(%arg0: i32, %arg1: i32) -> (i32, i32) {
    %c0_i32 = arith.constant 0 : i32
    %c0_i32_0 = arith.constant 0 : i32
    %c0_i32_1 = arith.constant 0 : i32
    return %c0_i32, %c0_i32_0 : i32, i32
  }
  func.func @transform_2(%arg0: i32, %arg1: i32) -> (i32, i32) {
    %c0_i32 = arith.constant 0 : i32
    %c0_i32_0 = arith.constant 0 : i32
    %c0_i32_1 = arith.constant 0 : i32
    return %c0_i32, %c0_i32_0 : i32, i32
  }
  func.func @transform_3(%arg0: i32, %arg1: i32) -> (i32, i32) {
    %c0_i32 = arith.constant 0 : i32
    %c0_i32_0 = arith.constant 0 : i32
    return %arg0, %c0_i32 : i32, i32
  }
}

module attributes {stable_mosaic.version = 11 : i64} {
  func.func @_gcn_agg_kernel(%arg0: i32, %arg1: i32, %arg2: memref<256x256xbf16, #tpu.memory_space<vmem>>, %arg3: memref<256x128xbf16, #tpu.memory_space<vmem>>, %arg4: memref<1x128xf32, #tpu.memory_space<vmem>>, %arg5: memref<256x128xf32, #tpu.memory_space<vmem>>, %arg6: memref<256x128xf32, #tpu.memory_space<vmem>>) attributes {dimension_semantics = [#tpu.dimension_semantics<parallel>, #tpu.dimension_semantics<arbitrary>], iteration_bounds = array<i64: 1, 1>, scalar_prefetch = 0 : i64, scratch_operands = 1 : i64, tpu.core_type = #tpu.core_type<tc>, window_params = [{transform_indices = @transform_0, window_bounds = array<i64: 256, 256>}, {pipeline_mode = #tpu.pipeline_mode<synchronous>, transform_indices = @transform_1, window_bounds = array<i64: 256, 128>}, {pipeline_mode = #tpu.pipeline_mode<synchronous>, transform_indices = @transform_2, window_bounds = array<i64: 1, 128>}, {transform_indices = @transform_3, window_bounds = array<i64: 256, 128>}]} {
    %c0_i32 = arith.constant 0 : i32
    %0 = arith.cmpi eq, %arg1, %c0_i32 : i32
    %1 = arith.extui %0 : i1 to i32
    %c0_i32_0 = arith.constant 0 : i32
    %2 = arith.cmpi ne, %1, %c0_i32_0 : i32
    scf.if %2 {
      %cst_9 = arith.constant 0.000000e+00 : f32
      %15 = vector.broadcast %cst_9 : f32 to vector<256x128xf32>
      %c0_10 = arith.constant 0 : index
      %c0_11 = arith.constant 0 : index
      %16 = vector.load %arg6[%c0_10, %c0_11] : memref<256x128xf32, #tpu.memory_space<vmem>>, vector<256x128xf32>
      tpu.vector_store %arg6[%c0_10, %c0_11], %15 {strides = array<i32>} : memref<256x128xf32, #tpu.memory_space<vmem>>, vector<256x128xf32>,
    } else {
    }
    %c256_i32 = arith.constant 256 : i32
    %3 = arith.muli %arg1, %c256_i32 : i32
    %4 = tpu.assume_multiple %3, 256 : i32
    %5 = arith.index_cast %4 : i32 to index
    %c0 = arith.constant 0 : index
    %6 = vector.load %arg3[%5, %c0] : memref<256x128xbf16, #tpu.memory_space<vmem>>, vector<256x128xbf16>
    %c0_1 = arith.constant 0 : index
    %c0_2 = arith.constant 0 : index
    %7 = vector.load %arg6[%c0_1, %c0_2] : memref<256x128xf32, #tpu.memory_space<vmem>>, vector<256x128xf32>
    %c0_3 = arith.constant 0 : index
    %c0_4 = arith.constant 0 : index
    %8 = vector.load %arg2[%c0_3, %c0_4] : memref<256x256xbf16, #tpu.memory_space<vmem>>, vector<256x256xbf16>
    %cst = arith.constant dense<0.000000e+00> : vector<256x128xf32>
    %9 = tpu.matmul %8, %6, %cst {dimension_numbers = #tpu.dot_dimension_numbers<[1], [0], [0], [1], [0, 0, 1, 1], [], []>} : vector<256x256xbf16>, vector<256x128xbf16>, vector<256x128xf32> -> vector<256x128xf32>
    %10 = arith.addf %7, %9 : vector<256x128xf32>
    %c0_5 = arith.constant 0 : index
    %c0_6 = arith.constant 0 : index
    %11 = vector.load %arg6[%c0_5, %c0_6] : memref<256x128xf32, #tpu.memory_space<vmem>>, vector<256x128xf32>
    tpu.vector_store %arg6[%c0_5, %c0_6], %10 {strides = array<i32>} : memref<256x128xf32, #tpu.memory_space<vmem>>, vector<256x128xf32>,
    %c0_i32_7 = arith.constant 0 : i32
    %12 = arith.cmpi eq, %arg1, %c0_i32_7 : i32
    %13 = arith.extui %12 : i1 to i32
    %c0_i32_8 = arith.constant 0 : i32
    %14 = arith.cmpi ne, %13, %c0_i32_8 : i32
    scf.if %14 {
      %c0_9 = arith.constant 0 : index
      %c0_10 = arith.constant 0 : index
      %15 = vector.load %arg6[%c0_9, %c0_10] : memref<256x128xf32, #tpu.memory_space<vmem>>, vector<256x128xf32>
      %c0_11 = arith.constant 0 : index
      %c0_12 = arith.constant 0 : index
      %16 = vector.load %arg4[%c0_11, %c0_12] : memref<1x128xf32, #tpu.memory_space<vmem>>, vector<1x128xf32>
      %17 = vector.broadcast %16 : vector<1x128xf32> to vector<256x128xf32>
      %18 = arith.addf %15, %17 : vector<256x128xf32>
      %c0_13 = arith.constant 0 : index
      %c0_14 = arith.constant 0 : index
      %19 = vector.load %arg5[%c0_13, %c0_14] : memref<256x128xf32, #tpu.memory_space<vmem>>, vector<256x128xf32>
      tpu.vector_store %arg5[%c0_13, %c0_14], %18 {strides = array<i32>} : memref<256x128xf32, #tpu.memory_space<vmem>>, vector<256x128xf32>,
    } else {
    }
    return
  }
  func.func @transform_0(%arg0: i32, %arg1: i32) -> (i32, i32) {
    %c0_i32 = arith.constant 0 : i32
    return %arg0, %arg1 : i32, i32
  }
  func.func @transform_1(%arg0: i32, %arg1: i32) -> (i32, i32) {
    %c0_i32 = arith.constant 0 : i32
    %c0_i32_0 = arith.constant 0 : i32
    %c0_i32_1 = arith.constant 0 : i32
    return %c0_i32, %c0_i32_0 : i32, i32
  }
  func.func @transform_2(%arg0: i32, %arg1: i32) -> (i32, i32) {
    %c0_i32 = arith.constant 0 : i32
    %c0_i32_0 = arith.constant 0 : i32
    %c0_i32_1 = arith.constant 0 : i32
    return %c0_i32, %c0_i32_0 : i32, i32
  }
  func.func @transform_3(%arg0: i32, %arg1: i32) -> (i32, i32) {
    %c0_i32 = arith.constant 0 : i32
    %c0_i32_0 = arith.constant 0 : i32
    return %arg0, %c0_i32 : i32, i32
  }
}

</mosaic_0001>

<llo_original>
// kernel: variational_gnn_encoder.2
$region0: #{variational_gnn_encoder.2}
  #allocation0 [shape = 'u32[]', space=smem, size = 0x4, offset = 0x4, fixed_abs, tag = 'smem constant byte address 0x4 - core index']
  #allocation1 [shape = 'u32[144,128]{1,0:T(1,128)}', space=vmem, size = 0x12000, scoped, tag = 'internal scratch']
  #allocation2 [shape = 'f32[256,128]{1,0:T(8,128)}', space=vmem, size = 0x20000, scoped, tag = 'scratch operand']
  %s0 = inlined_call_operand.vmem [shape: bf16[256,256], index: 0, kind: input, shape index: {}]
  %s1 = inlined_call_operand.vmem [shape: bf16[256,128], index: 1, kind: input, shape index: {}]
  %s2 = inlined_call_operand.vmem [shape: f32[1,128], index: 2, kind: input, shape index: {}]
  %s3 = inlined_call_operand.vmem [shape: bf16[256,128], index: 3, kind: output, shape index: {}]
  %s4 = sld [smem:[#allocation0]]
  $region30: #{variational_gnn_encoder.2} parent=0
    _
  %s6 = ssub.s32 1, %s4
  %s7 = scalar_select 0, %s6, %s4
  // Predicated region
  $region2: #{variational_gnn_encoder.2} parent=0 // pred_check
    _
  $region3: #{variational_gnn_encoder.2} parent=0 // pred_check_branch
    %9 = sbr.rel (0) target = $region5
  $region4: #{variational_gnn_encoder.2} parent=0 // pred_region
    _
  $region5: #{variational_gnn_encoder.2} parent=0 // pred_fallthru
    _
  // Predicated region
  $region6: #{variational_gnn_encoder.2} parent=0 // pred_check
    _
  $region7: #{variational_gnn_encoder.2} parent=0 // pred_check_branch
    %11 = sbr.rel (0) target = $region9
  $region8: #{variational_gnn_encoder.2} parent=0 // pred_region
    _
  $region9: #{variational_gnn_encoder.2} parent=0 // pred_fallthru
    _
  // Predicated region
  $region10: #{variational_gnn_encoder.2} parent=0 // pred_check
    _
  $region11: #{variational_gnn_encoder.2} parent=0 // pred_check_branch
    %13 = sbr.rel (0) target = $region13
  $region12: #{variational_gnn_encoder.2} parent=0 // pred_region
    _
  $region13: #{variational_gnn_encoder.2} parent=0 // pred_fallthru
    _
  %p15 = scmp.eq.s32.totalorder 0, 0
  // Predicated region
  $region14: #{variational_gnn_encoder.2} parent=0 // pred_check
    %p16 = pneg %p15
  $region15: #{variational_gnn_encoder.2} parent=0 // pred_check_branch
    %18 = sbr.rel (%p16) target = $region17
  $region16: #{variational_gnn_encoder.2} parent=0 // pred_region
    %19 = vst [vmem:[#allocation2] sm:$0xff] 0.0
    %20 = vst [vmem:[#allocation2 + $0x8] sm:$0xff] 0.0
    %21 = vst [vmem:[#allocation2 + $0x10] sm:$0xff] 0.0
    %22 = vst [vmem:[#allocation2 + $0x18] sm:$0xff] 0.0
    %23 = vst [vmem:[#allocation2 + $0x20] sm:$0xff] 0.0
    %24 = vst [vmem:[#allocation2 + $0x28] sm:$0xff] 0.0
    %25 = vst [vmem:[#allocation2 + $0x30] sm:$0xff] 0.0
    %26 = vst [vmem:[#allocation2 + $0x38] sm:$0xff] 0.0
    %27 = vst [vmem:[#allocation2 + $0x40] sm:$0xff] 0.0
    %28 = vst [vmem:[#allocation2 + $0x48] sm:$0xff] 0.0
    %29 = vst [vmem:[#allocation2 + $0x50] sm:$0xff] 0.0
    %30 = vst [vmem:[#allocation2 + $0x58] sm:$0xff] 0.0
    %31 = vst [vmem:[#allocation2 + $0x60] sm:$0xff] 0.0
    %32 = vst [vmem:[#allocation2 + $0x68] sm:$0xff] 0.0
    %33 = vst [vmem:[#allocation2 + $0x70] sm:$0xff] 0.0
    %34 = vst [vmem:[#allocation2 + $0x78] sm:$0xff] 0.0
    %35 = vst [vmem:[#allocation2 + $0x80] sm:$0xff] 0.0
    %36 = vst [vmem:[#allocation2 + $0x88] sm:$0xff] 0.0
    %37 = vst [vmem:[#allocation2 + $0x90] sm:$0xff] 0.0
    %38 = vst [vmem:[#allocation2 + $0x98] sm:$0xff] 0.0
    %39 = vst [vmem:[#allocation2 + $0xa0] sm:$0xff] 0.0
    %40 = vst [vmem:[#allocation2 + $0xa8] sm:$0xff] 0.0
    %41 = vst [vmem:[#allocation2 + $0xb0] sm:$0xff] 0.0
    %42 = vst [vmem:[#allocation2 + $0xb8] sm:$0xff] 0.0
    %43 = vst [vmem:[#allocation2 + $0xc0] sm:$0xff] 0.0
    %44 = vst [vmem:[#allocation2 + $0xc8] sm:$0xff] 0.0
    %45 = vst [vmem:[#allocation2 + $0xd0] sm:$0xff] 0.0
    %46 = vst [vmem:[#allocation2 + $0xd8] sm:$0xff] 0.0
    %47 = vst [vmem:[#allocation2 + $0xe0] sm:$0xff] 0.0
    %48 = vst [vmem:[#allocation2 + $0xe8] sm:$0xff] 0.0
    %49 = vst [vmem:[#allocation2 + $0xf0] sm:$0xff] 0.0
    %50 = vst [vmem:[#allocation2 + $0xf8] sm:$0xff] 0.0
  $region17: #{variational_gnn_encoder.2} parent=0 // pred_fallthru
    _
  %s51 = smul.u32 0, 256
  %s52 = sshra.s32 %s51, 3
  %s53 = sand.u32 %s51, 7
  %s54 = smul.addr %s52, 4
  %s55 = scalar_lea.vmem %s1, %s54
  %v56 = vld [vmem:[%s55] sm:$0xf]
  %v57 = vld [vmem:[%s55 + $0x4] sm:$0xf]
  %v58 = vld [vmem:[%s55 + $0x8] sm:$0xf]
  %v59 = vld [vmem:[%s55 + $0xc] sm:$0xf]
  %v60 = vld [vmem:[%s55 + $0x10] sm:$0xf]
  %v61 = vld [vmem:[%s55 + $0x14] sm:$0xf]
  %v62 = vld [vmem:[%s55 + $0x18] sm:$0xf]
  %v63 = vld [vmem:[%s55 + $0x1c] sm:$0xf]
  %v64 = vld [vmem:[%s55 + $0x20] sm:$0xf]
  %v65 = vld [vmem:[%s55 + $0x24] sm:$0xf]
  %v66 = vld [vmem:[%s55 + $0x28] sm:$0xf]
  %v67 = vld [vmem:[%s55 + $0x2c] sm:$0xf]
  %v68 = vld [vmem:[%s55 + $0x30] sm:$0xf]
  %v69 = vld [vmem:[%s55 + $0x34] sm:$0xf]
  %v70 = vld [vmem:[%s55 + $0x38] sm:$0xf]
  %v71 = vld [vmem:[%s55 + $0x3c] sm:$0xf]
  %v72 = vld [vmem:[%s55 + $0x40] sm:$0xf]
  %v73 = vld [vmem:[%s55 + $0x44] sm:$0xf]
  %v74 = vld [vmem:[%s55 + $0x48] sm:$0xf]
  %v75 = vld [vmem:[%s55 + $0x4c] sm:$0xf]
  %v76 = vld [vmem:[%s55 + $0x50] sm:$0xf]
  %v77 = vld [vmem:[%s55 + $0x54] sm:$0xf]
  %v78 = vld [vmem:[%s55 + $0x58] sm:$0xf]
  %v79 = vld [vmem:[%s55 + $0x5c] sm:$0xf]
  %v80 = vld [vmem:[%s55 + $0x60] sm:$0xf]
  %v81 = vld [vmem:[%s55 + $0x64] sm:$0xf]
  %v82 = vld [vmem:[%s55 + $0x68] sm:$0xf]
  %v83 = vld [vmem:[%s55 + $0x6c] sm:$0xf]
  %v84 = vld [vmem:[%s55 + $0x70] sm:$0xf]
  %v85 = vld [vmem:[%s55 + $0x74] sm:$0xf]
  %v86 = vld [vmem:[%s55 + $0x78] sm:$0xf]
  %v87 = vld [vmem:[%s55 + $0x7c] sm:$0xf]
  %v88 = vld [vmem:[#allocation2] sm:$0xff]
  %v89 = vld [vmem:[#allocation2 + $0x8] sm:$0xff]
  %v90 = vld [vmem:[#allocation2 + $0x10] sm:$0xff]
  %v91 = vld [vmem:[#allocation2 + $0x18] sm:$0xff]
  %v92 = vld [vmem:[#allocation2 + $0x20] sm:$0xff]
  %v93 = vld [vmem:[#allocation2 + $0x28] sm:$0xff]
  %v94 = vld [vmem:[#allocation2 + $0x30] sm:$0xff]
  %v95 = vld [vmem:[#allocation2 + $0x38] sm:$0xff]
  %v96 = vld [vmem:[#allocation2 + $0x40] sm:$0xff]
  %v97 = vld [vmem:[#allocation2 + $0x48] sm:$0xff]
  %v98 = vld [vmem:[#allocation2 + $0x50] sm:$0xff]
  %v99 = vld [vmem:[#allocation2 + $0x58] sm:$0xff]
  %v100 = vld [vmem:[#allocation2 + $0x60] sm:$0xff]
  %v101 = vld [vmem:[#allocation2 + $0x68] sm:$0xff]
  %v102 = vld [vmem:[#allocation2 + $0x70] sm:$0xff]
  %v103 = vld [vmem:[#allocation2 + $0x78] sm:$0xff]
  %v104 = vld [vmem:[#allocation2 + $0x80] sm:$0xff]
  %v105 = vld [vmem:[#allocation2 + $0x88] sm:$0xff]
  %v106 = vld [vmem:[#allocation2 + $0x90] sm:$0xff]
  %v107 = vld [vmem:[#allocation2 + $0x98] sm:$0xff]
  %v108 = vld [vmem:[#allocation2 + $0xa0] sm:$0xff]
  %v109 = vld [vmem:[#allocation2 + $0xa8] sm:$0xff]
  %v110 = vld [vmem:[#allocation2 + $0xb0] sm:$0xff]
  %v111 = vld [vmem:[#allocation2 + $0xb8] sm:$0xff]
  %v112 = vld [vmem:[#allocation2 + $0xc0] sm:$0xff]
  %v113 = vld [vmem:[#allocation2 + $0xc8] sm:$0xff]
  %v114 = vld [vmem:[#allocation2 + $0xd0] sm:$0xff]
  %v115 = vld [vmem:[#allocation2 + $0xd8] sm:$0xff]
  %v116 = vld [vmem:[#allocation2 + $0xe0] sm:$0xff]
  %v117 = vld [vmem:[#allocation2 + $0xe8] sm:$0xff]
  %v118 = vld [vmem:[#allocation2 + $0xf0] sm:$0xff]
  %v119 = vld [vmem:[#allocation2 + $0xf8] sm:$0xff]
  %v120 = vld [vmem:[%s0] sm:$0xff]
  %v121 = vld [vmem:[%s0 + $0x8] sm:$0xff]
  %v122 = vld [vmem:[%s0 + $0x10] sm:$0xff]
  %v123 = vld [vmem:[%s0 + $0x18] sm:$0xff]
  %v124 = vld [vmem:[%s0 + $0x20] sm:$0xff]
  %v125 = vld [vmem:[%s0 + $0x28] sm:$0xff]
  %v126 = vld [vmem:[%s0 + $0x30] sm:$0xff]
  %v127 = vld [vmem:[%s0 + $0x38] sm:$0xff]
  %v128 = vld [vmem:[%s0 + $0x40] sm:$0xff]
  %v129 = vld [vmem:[%s0 + $0x48] sm:$0xff]
  %v130 = vld [vmem:[%s0 + $0x50] sm:$0xff]
  %v131 = vld [vmem:[%s0 + $0x58] sm:$0xff]
  %v132 = vld [vmem:[%s0 + $0x60] sm:$0xff]
  %v133 = vld [vmem:[%s0 + $0x68] sm:$0xff]
  %v134 = vld [vmem:[%s0 + $0x70] sm:$0xff]
  %v135 = vld [vmem:[%s0 + $0x78] sm:$0xff]
  %v136 = vld [vmem:[%s0 + $0x80] sm:$0xff]
  %v137 = vld [vmem:[%s0 + $0x88] sm:$0xff]
  %v138 = vld [vmem:[%s0 + $0x90] sm:$0xff]
  %v139 = vld [vmem:[%s0 + $0x98] sm:$0xff]
  %v140 = vld [vmem:[%s0 + $0xa0] sm:$0xff]
  %v141 = vld [vmem:[%s0 + $0xa8] sm:$0xff]
  %v142 = vld [vmem:[%s0 + $0xb0] sm:$0xff]
  %v143 = vld [vmem:[%s0 + $0xb8] sm:$0xff]
  %v144 = vld [vmem:[%s0 + $0xc0] sm:$0xff]
  %v145 = vld [vmem:[%s0 + $0xc8] sm:$0xff]
  %v146 = vld [vmem:[%s0 + $0xd0] sm:$0xff]
  %v147 = vld [vmem:[%s0 + $0xd8] sm:$0xff]
  %v148 = vld [vmem:[%s0 + $0xe0] sm:$0xff]
  %v149 = vld [vmem:[%s0 + $0xe8] sm:$0xff]
  %v150 = vld [vmem:[%s0 + $0xf0] sm:$0xff]
  %v151 = vld [vmem:[%s0 + $0xf8] sm:$0xff]
  %v184 = vunpack.c.l.b16 %v120
  %v185 = vunpack.c.h.b16 %v120
  %v186 = vunpack.c.l.b16 %v121
  %v187 = vunpack.c.h.b16 %v121
  %v188 = vunpack.c.l.b16 %v122
  %v189 = vunpack.c.h.b16 %v122
  %v190 = vunpack.c.l.b16 %v123
  %v191 = vunpack.c.h.b16 %v123
  %v192 = vunpack.c.l.b16 %v124
  %v193 = vunpack.c.h.b16 %v124
  %v194 = vunpack.c.l.b16 %v125
  %v195 = vunpack.c.h.b16 %v125
  %v196 = vunpack.c.l.b16 %v126
  %v197 = vunpack.c.h.b16 %v126
  %v198 = vunpack.c.l.b16 %v127
  %v199 = vunpack.c.h.b16 %v127
  %v200 = vunpack.c.l.b16 %v128
  %v201 = vunpack.c.h.b16 %v128
  %v202 = vunpack.c.l.b16 %v129
  %v203 = vunpack.c.h.b16 %v129
  %v204 = vunpack.c.l.b16 %v130
  %v205 = vunpack.c.h.b16 %v130
  %v206 = vunpack.c.l.b16 %v131
  %v207 = vunpack.c.h.b16 %v131
  %v208 = vunpack.c.l.b16 %v132
  %v209 = vunpack.c.h.b16 %v132
  %v210 = vunpack.c.l.b16 %v133
  %v211 = vunpack.c.h.b16 %v133
  %v212 = vunpack.c.l.b16 %v134
  %v213 = vunpack.c.h.b16 %v134
  %v214 = vunpack.c.l.b16 %v135
  %v215 = vunpack.c.h.b16 %v135
  %v216 = vunpack.c.l.b16 %v136
  %v217 = vunpack.c.h.b16 %v136
  %v218 = vunpack.c.l.b16 %v137
  %v219 = vunpack.c.h.b16 %v137
  %v220 = vunpack.c.l.b16 %v138
  %v221 = vunpack.c.h.b16 %v138
  %v222 = vunpack.c.l.b16 %v139
  %v223 = vunpack.c.h.b16 %v139
  %v224 = vunpack.c.l.b16 %v140
  %v225 = vunpack.c.h.b16 %v140
  %v226 = vunpack.c.l.b16 %v141
  %v227 = vunpack.c.h.b16 %v141
  %v228 = vunpack.c.l.b16 %v142
  %v229 = vunpack.c.h.b16 %v142
  %v230 = vunpack.c.l.b16 %v143
  %v231 = vunpack.c.h.b16 %v143
  %v232 = vunpack.c.l.b16 %v144
  %v233 = vunpack.c.h.b16 %v144
  %v234 = vunpack.c.l.b16 %v145
  %v235 = vunpack.c.h.b16 %v145
  %v236 = vunpack.c.l.b16 %v146
  %v237 = vunpack.c.h.b16 %v146
  %v238 = vunpack.c.l.b16 %v147
  %v239 = vunpack.c.h.b16 %v147
  %v240 = vunpack.c.l.b16 %v148
  %v241 = vunpack.c.h.b16 %v148
  %v242 = vunpack.c.l.b16 %v149
  %v243 = vunpack.c.h.b16 %v149
  %v244 = vunpack.c.l.b16 %v150
  %v245 = vunpack.c.h.b16 %v150
  %v246 = vunpack.c.l.b16 %v151
  %v247 = vunpack.c.h.b16 %v151
  %v248 = vpack.c.b16 %v186, %v184
  %v249 = vpack.c.b16 %v187, %v185
  %v250 = vpack.c.b16 %v190, %v188
  %v251 = vpack.c.b16 %v191, %v189
  %v252 = vpack.c.b16 %v194, %v192
  %v253 = vpack.c.b16 %v195, %v193
  %v254 = vpack.c.b16 %v198, %v196
  %v255 = vpack.c.b16 %v199, %v197
  %v256 = vpack.c.b16 %v202, %v200
  %v257 = vpack.c.b16 %v203, %v201
  %v258 = vpack.c.b16 %v206, %v204
  %v259 = vpack.c.b16 %v207, %v205
  %v260 = vpack.c.b16 %v210, %v208
  %v261 = vpack.c.b16 %v211, %v209
  %v262 = vpack.c.b16 %v214, %v212
  %v263 = vpack.c.b16 %v215, %v213
  %v264 = vpack.c.b16 %v218, %v216
  %v265 = vpack.c.b16 %v219, %v217
  %v266 = vpack.c.b16 %v222, %v220
  %v267 = vpack.c.b16 %v223, %v221
  %v268 = vpack.c.b16 %v226, %v224
  %v269 = vpack.c.b16 %v227, %v225
  %v270 = vpack.c.b16 %v230, %v228
  %v271 = vpack.c.b16 %v231, %v229
  %v272 = vpack.c.b16 %v234, %v232
  %v273 = vpack.c.b16 %v235, %v233
  %v274 = vpack.c.b16 %v238, %v236
  %v275 = vpack.c.b16 %v239, %v237
  %v276 = vpack.c.b16 %v242, %v240
  %v277 = vpack.c.b16 %v243, %v241
  %v278 = vpack.c.b16 %v246, %v244
  %v279 = vpack.c.b16 %v247, %v245
  %v344 = vunpack.c.l.b16 %v56
  %v345 = vunpack.c.l.b16 %v57
  %v346 = vunpack.c.l.b16 %v58
  %v347 = vunpack.c.l.b16 %v59
  %v348 = vunpack.c.l.b16 %v60
  %v349 = vunpack.c.l.b16 %v61
  %v350 = vunpack.c.l.b16 %v62
  %v351 = vunpack.c.l.b16 %v63
  %v352 = vunpack.c.l.b16 %v64
  %v353 = vunpack.c.l.b16 %v65
  %v354 = vunpack.c.l.b16 %v66
  %v355 = vunpack.c.l.b16 %v67
  %v356 = vunpack.c.l.b16 %v68
  %v357 = vunpack.c.l.b16 %v69
  %v358 = vunpack.c.l.b16 %v70
  %v359 = vunpack.c.l.b16 %v71
  %v360 = vunpack.c.l.b16 %v72
  %v361 = vunpack.c.l.b16 %v73
  %v362 = vunpack.c.l.b16 %v74
  %v363 = vunpack.c.l.b16 %v75
  %v364 = vunpack.c.l.b16 %v76
  %v365 = vunpack.c.l.b16 %v77
  %v366 = vunpack.c.l.b16 %v78
  %v367 = vunpack.c.l.b16 %v79
  %v368 = vunpack.c.l.b16 %v80
  %v369 = vunpack.c.l.b16 %v81
  %v370 = vunpack.c.l.b16 %v82
  %v371 = vunpack.c.l.b16 %v83
  %v372 = vunpack.c.l.b16 %v84
  %v373 = vunpack.c.l.b16 %v85
  %v374 = vunpack.c.l.b16 %v86
  %v375 = vunpack.c.l.b16 %v87
  %v376 = vpack.c.b16 %v345, %v344
  %v377 = vpack.c.b16 %v347, %v346
  %v378 = vpack.c.b16 %v349, %v348
  %v379 = vpack.c.b16 %v351, %v350
  %v380 = vpack.c.b16 %v353, %v352
  %v381 = vpack.c.b16 %v355, %v354
  %v382 = vpack.c.b16 %v357, %v356
  %v383 = vpack.c.b16 %v359, %v358
  %v384 = vpack.c.b16 %v361, %v360
  %v385 = vpack.c.b16 %v363, %v362
  %v386 = vpack.c.b16 %v365, %v364
  %v387 = vpack.c.b16 %v367, %v366
  %v388 = vpack.c.b16 %v369, %v368
  %v389 = vpack.c.b16 %v371, %v370
  %v390 = vpack.c.b16 %v373, %v372
  %v391 = vpack.c.b16 %v375, %v374
  %408 = vmatprep.subr.bf16.mxu0 0
  %409 = vmatpush1.bf16.msra.mxu0 %v376
  %410 = vmatprep.subr.bf16.mxu0 0
  %411 = vmatpush1.bf16.msra.mxu0 %v377
  %412 = vmatprep.subr.bf16.mxu0 0
  %413 = vmatpush1.bf16.msra.mxu0 %v378
  %414 = vmatprep.subr.bf16.mxu0 0
  %415 = vmatpush1.bf16.msra.mxu0 %v379
  %416 = vmatprep.subr.bf16.mxu0 0
  %417 = vmatpush1.bf16.msra.mxu0 %v380
  %418 = vmatprep.subr.bf16.mxu0 0
  %419 = vmatpush1.bf16.msra.mxu0 %v381
  %420 = vmatprep.subr.bf16.mxu0 0
  %421 = vmatpush1.bf16.msra.mxu0 %v382
  %422 = vmatprep.subr.bf16.mxu0 0
  %423 = vmatpush1.bf16.msra.mxu0 %v383
  %424 = vmatprep.subr.bf16.mxu0 0
  %425 = vmatpush1.bf16.msra.mxu0 %v384
  %426 = vmatprep.subr.bf16.mxu0 0
  %427 = vmatpush1.bf16.msra.mxu0 %v385
  %428 = vmatprep.subr.bf16.mxu0 0
  %429 = vmatpush1.bf16.msra.mxu0 %v386
  %430 = vmatprep.subr.bf16.mxu0 0
  %431 = vmatpush1.bf16.msra.mxu0 %v387
  %432 = vmatprep.subr.bf16.mxu0 0
  %433 = vmatpush1.bf16.msra.mxu0 %v388
  %434 = vmatprep.subr.bf16.mxu0 0
  %435 = vmatpush1.bf16.msra.mxu0 %v389
  %436 = vmatprep.subr.bf16.mxu0 0
  %437 = vmatpush1.bf16.msra.mxu0 %v390
  %438 = vmatprep.subr.bf16.mxu0 0
  %439 = vmatpush1.bf16.msra.mxu0 %v391
  %440 = vmatprep.mubr.bf16.mxu0 %v249
  %441 = vmatmul.mubr.bf16.gmra.mrb[0].mxu0 %v248
  %v442 = vpop.f32.mrb[0].mxu0
  %v443 = vadd.f32 0.0, %v442
  %v444 = vpop.f32.mrb[0].mxu0
  %v445 = vpop.f32.mrb[0].mxu0
  %v446 = vadd.f32 0.0, %v445
  %v447 = vpop.f32.mrb[0].mxu0
  %448 = vmatprep.mubr.bf16.mxu0 %v251
  %449 = vmatmul.mubr.bf16.gmra.mrb[0].mxu0 %v250
  %v450 = vpop.f32.mrb[0].mxu0
  %v451 = vadd.f32 0.0, %v450
  %v452 = vpop.f32.mrb[0].mxu0
  %v453 = vpop.f32.mrb[0].mxu0
  %v454 = vadd.f32 0.0, %v453
  %v455 = vpop.f32.mrb[0].mxu0
  %456 = vmatprep.mubr.bf16.mxu0 %v253
  %457 = vmatmul.mubr.bf16.gmra.mrb[0].mxu0 %v252
  %v458 = vpop.f32.mrb[0].mxu0
  %v459 = vadd.f32 0.0, %v458
  %v460 = vpop.f32.mrb[0].mxu0
  %v461 = vpop.f32.mrb[0].mxu0
  %v462 = vadd.f32 0.0, %v461
  %v463 = vpop.f32.mrb[0].mxu0
  %464 = vmatprep.mubr.bf16.mxu0 %v255
  %465 = vmatmul.mubr.bf16.gmra.mrb[0].mxu0 %v254
  %v466 = vpop.f32.mrb[0].mxu0
  %v467 = vadd.f32 0.0, %v466
  %v468 = vpop.f32.mrb[0].mxu0
  %v469 = vpop.f32.mrb[0].mxu0
  %v470 = vadd.f32 0.0, %v469
  %v471 = vpop.f32.mrb[0].mxu0
  %472 = vmatprep.mubr.bf16.mxu0 %v257
  %473 = vmatmul.mubr.bf16.gmra.mrb[0].mxu0 %v256
  %v474 = vpop.f32.mrb[0].mxu0
  %v475 = vadd.f32 0.0, %v474
  %v476 = vpop.f32.mrb[0].mxu0
  %v477 = vpop.f32.mrb[0].mxu0
  %v478 = vadd.f32 0.0, %v477
  %v479 = vpop.f32.mrb[0].mxu0
  %480 = vmatprep.mubr.bf16.mxu0 %v259
  %481 = vmatmul.mubr.bf16.gmra.mrb[0].mxu0 %v258
  %v482 = vpop.f32.mrb[0].mxu0
  %v483 = vadd.f32 0.0, %v482
  %v484 = vpop.f32.mrb[0].mxu0
  %v485 = vpop.f32.mrb[0].mxu0
  %v486 = vadd.f32 0.0, %v485
  %v487 = vpop.f32.mrb[0].mxu0
  %488 = vmatprep.mubr.bf16.mxu0 %v261
  %489 = vmatmul.mubr.bf16.gmra.mrb[0].mxu0 %v260
  %v490 = vpop.f32.mrb[0].mxu0
  %v491 = vadd.f32 0.0, %v490
  %v492 = vpop.f32.mrb[0].mxu0
  %v493 = vpop.f32.mrb[0].mxu0
  %v494 = vadd.f32 0.0, %v493
  %v495 = vpop.f32.mrb[0].mxu0
  %496 = vmatprep.mubr.bf16.mxu0 %v263
  %497 = vmatmul.mubr.bf16.gmra.mrb[0].mxu0 %v262
  %v498 = vpop.f32.mrb[0].mxu0
  %v499 = vadd.f32 0.0, %v498
  %v500 = vpop.f32.mrb[0].mxu0
  %v501 = vpop.f32.mrb[0].mxu0
  %v502 = vadd.f32 0.0, %v501
  %v503 = vpop.f32.mrb[0].mxu0
  %504 = vmatprep.mubr.bf16.mxu0 %v265
  %505 = vmatmul.mubr.bf16.gmra.mrb[0].mxu0 %v264
  %v506 = vpop.f32.mrb[0].mxu0
  %v507 = vadd.f32 0.0, %v506
  %v508 = vpop.f32.mrb[0].mxu0
  %v509 = vpop.f32.mrb[0].mxu0
  %v510 = vadd.f32 0.0, %v509
  %v511 = vpop.f32.mrb[0].mxu0
  %512 = vmatprep.mubr.bf16.mxu0 %v267
  %513 = vmatmul.mubr.bf16.gmra.mrb[0].mxu0 %v266
  %v514 = vpop.f32.mrb[0].mxu0
  %v515 = vadd.f32 0.0, %v514
  %v516 = vpop.f32.mrb[0].mxu0
  %v517 = vpop.f32.mrb[0].mxu0
  %v518 = vadd.f32 0.0, %v517
  %v519 = vpop.f32.mrb[0].mxu0
  %520 = vmatprep.mubr.bf16.mxu0 %v269
  %521 = vmatmul.mubr.bf16.gmra.mrb[0].mxu0 %v268
  %v522 = vpop.f32.mrb[0].mxu0
  %v523 = vadd.f32 0.0, %v522
  %v524 = vpop.f32.mrb[0].mxu0
  %v525 = vpop.f32.mrb[0].mxu0
  %v526 = vadd.f32 0.0, %v525
  %v527 = vpop.f32.mrb[0].mxu0
  %528 = vmatprep.mubr.bf16.mxu0 %v271
  %529 = vmatmul.mubr.bf16.gmra.mrb[0].mxu0 %v270
  %v530 = vpop.f32.mrb[0].mxu0
  %v531 = vadd.f32 0.0, %v530
  %v532 = vpop.f32.mrb[0].mxu0
  %v533 = vpop.f32.mrb[0].mxu0
  %v534 = vadd.f32 0.0, %v533
  %v535 = vpop.f32.mrb[0].mxu0
  %536 = vmatprep.mubr.bf16.mxu0 %v273
  %537 = vmatmul.mubr.bf16.gmra.mrb[0].mxu0 %v272
  %v538 = vpop.f32.mrb[0].mxu0
  %v539 = vadd.f32 0.0, %v538
  %v540 = vpop.f32.mrb[0].mxu0
  %v541 = vpop.f32.mrb[0].mxu0
  %v542 = vadd.f32 0.0, %v541
  %v543 = vpop.f32.mrb[0].mxu0
  %544 = vmatprep.mubr.bf16.mxu0 %v275
  %545 = vmatmul.mubr.bf16.gmra.mrb[0].mxu0 %v274
  %v546 = vpop.f32.mrb[0].mxu0
  %v547 = vadd.f32 0.0, %v546
  %v548 = vpop.f32.mrb[0].mxu0
  %v549 = vpop.f32.mrb[0].mxu0
  %v550 = vadd.f32 0.0, %v549
  %v551 = vpop.f32.mrb[0].mxu0
  %552 = vmatprep.mubr.bf16.mxu0 %v277
  %553 = vmatmul.mubr.bf16.gmra.mrb[0].mxu0 %v276
  %v554 = vpop.f32.mrb[0].mxu0
  %v555 = vadd.f32 0.0, %v554
  %v556 = vpop.f32.mrb[0].mxu0
  %v557 = vpop.f32.mrb[0].mxu0
  %v558 = vadd.f32 0.0, %v557
  %v559 = vpop.f32.mrb[0].mxu0
  %560 = vmatprep.mubr.bf16.mxu0 %v279
  %561 = vmatmul.mubr.bf16.gmra.mrb[0].mxu0 %v278
  %v562 = vpop.f32.mrb[0].mxu0
  %v563 = vadd.f32 0.0, %v562
  %v564 = vpop.f32.mrb[0].mxu0
  %v565 = vpop.f32.mrb[0].mxu0
  %v566 = vadd.f32 0.0, %v565
  %v567 = vpop.f32.mrb[0].mxu0
  %568 = vdwg.mxu0
  %v569 = vadd.f32 %v88, %v443
  %v570 = vadd.f32 %v89, %v446
  %v571 = vadd.f32 %v90, %v451
  %v572 = vadd.f32 %v91, %v454
  %v573 = vadd.f32 %v92, %v459
  %v574 = vadd.f32 %v93, %v462
  %v575 = vadd.f32 %v94, %v467
  %v576 = vadd.f32 %v95, %v470
  %v577 = vadd.f32 %v96, %v475
  %v578 = vadd.f32 %v97, %v478
  %v579 = vadd.f32 %v98, %v483
  %v580 = vadd.f32 %v99, %v486
  %v581 = vadd.f32 %v100, %v491
  %v582 = vadd.f32 %v101, %v494
  %v583 = vadd.f32 %v102, %v499
  %v584 = vadd.f32 %v103, %v502
  %v585 = vadd.f32 %v104, %v507
  %v586 = vadd.f32 %v105, %v510
  %v587 = vadd.f32 %v106, %v515
  %v588 = vadd.f32 %v107, %v518
  %v589 = vadd.f32 %v108, %v523
  %v590 = vadd.f32 %v109, %v526
  %v591 = vadd.f32 %v110, %v531
  %v592 = vadd.f32 %v111, %v534
  %v593 = vadd.f32 %v112, %v539
  %v594 = vadd.f32 %v113, %v542
  %v595 = vadd.f32 %v114, %v547
  %v596 = vadd.f32 %v115, %v550
  %v597 = vadd.f32 %v116, %v555
  %v598 = vadd.f32 %v117, %v558
  %v599 = vadd.f32 %v118, %v563
  %v600 = vadd.f32 %v119, %v566
  %601 = vst [vmem:[#allocation2] sm:$0xff] %v569
  %602 = vst [vmem:[#allocation2 + $0x8] sm:$0xff] %v570
  %603 = vst [vmem:[#allocation2 + $0x10] sm:$0xff] %v571
  %604 = vst [vmem:[#allocation2 + $0x18] sm:$0xff] %v572
  %605 = vst [vmem:[#allocation2 + $0x20] sm:$0xff] %v573
  %606 = vst [vmem:[#allocation2 + $0x28] sm:$0xff] %v574
  %607 = vst [vmem:[#allocation2 + $0x30] sm:$0xff] %v575
  %608 = vst [vmem:[#allocation2 + $0x38] sm:$0xff] %v576
  %609 = vst [vmem:[#allocation2 + $0x40] sm:$0xff] %v577
  %610 = vst [vmem:[#allocation2 + $0x48] sm:$0xff] %v578
  %611 = vst [vmem:[#allocation2 + $0x50] sm:$0xff] %v579
  %612 = vst [vmem:[#allocation2 + $0x58] sm:$0xff] %v580
  %613 = vst [vmem:[#allocation2 + $0x60] sm:$0xff] %v581
  %614 = vst [vmem:[#allocation2 + $0x68] sm:$0xff] %v582
  %615 = vst [vmem:[#allocation2 + $0x70] sm:$0xff] %v583
  %616 = vst [vmem:[#allocation2 + $0x78] sm:$0xff] %v584
  %617 = vst [vmem:[#allocation2 + $0x80] sm:$0xff] %v585
  %618 = vst [vmem:[#allocation2 + $0x88] sm:$0xff] %v586
  %619 = vst [vmem:[#allocation2 + $0x90] sm:$0xff] %v587
  %620 = vst [vmem:[#allocation2 + $0x98] sm:$0xff] %v588
  %621 = vst [vmem:[#allocation2 + $0xa0] sm:$0xff] %v589
  %622 = vst [vmem:[#allocation2 + $0xa8] sm:$0xff] %v590
  %623 = vst [vmem:[#allocation2 + $0xb0] sm:$0xff] %v591
  %624 = vst [vmem:[#allocation2 + $0xb8] sm:$0xff] %v592
  %625 = vst [vmem:[#allocation2 + $0xc0] sm:$0xff] %v593
  %626 = vst [vmem:[#allocation2 + $0xc8] sm:$0xff] %v594
  %627 = vst [vmem:[#allocation2 + $0xd0] sm:$0xff] %v595
  %628 = vst [vmem:[#allocation2 + $0xd8] sm:$0xff] %v596
  %629 = vst [vmem:[#allocation2 + $0xe0] sm:$0xff] %v597
  %630 = vst [vmem:[#allocation2 + $0xe8] sm:$0xff] %v598
  %631 = vst [vmem:[#allocation2 + $0xf0] sm:$0xff] %v599
  %632 = vst [vmem:[#allocation2 + $0xf8] sm:$0xff] %v600
  // Predicated region
  $region18: #{variational_gnn_encoder.2} parent=0 // pred_check
    %p633 = pneg %p15
  $region19: #{variational_gnn_encoder.2} parent=0 // pred_check_branch
    %635 = sbr.rel (%p633) target = $region21
  $region20: #{variational_gnn_encoder.2} parent=0 // pred_region
    %v636 = vld [vmem:[#allocation2] sm:$0xff]
    %v637 = vld [vmem:[#allocation2 + $0x8] sm:$0xff]
    %v638 = vld [vmem:[#allocation2 + $0x10] sm:$0xff]
    %v639 = vld [vmem:[#allocation2 + $0x18] sm:$0xff]
    %v640 = vld [vmem:[#allocation2 + $0x20] sm:$0xff]
    %v641 = vld [vmem:[#allocation2 + $0x28] sm:$0xff]
    %v642 = vld [vmem:[#allocation2 + $0x30] sm:$0xff]
    %v643 = vld [vmem:[#allocation2 + $0x38] sm:$0xff]
    %v644 = vld [vmem:[#allocation2 + $0x40] sm:$0xff]
    %v645 = vld [vmem:[#allocation2 + $0x48] sm:$0xff]
    %v646 = vld [vmem:[#allocation2 + $0x50] sm:$0xff]
    %v647 = vld [vmem:[#allocation2 + $0x58] sm:$0xff]
    %v648 = vld [vmem:[#allocation2 + $0x60] sm:$0xff]
    %v649 = vld [vmem:[#allocation2 + $0x68] sm:$0xff]
    %v650 = vld [vmem:[#allocation2 + $0x70] sm:$0xff]
    %v651 = vld [vmem:[#allocation2 + $0x78] sm:$0xff]
    %v652 = vld [vmem:[#allocation2 + $0x80] sm:$0xff]
    %v653 = vld [vmem:[#allocation2 + $0x88] sm:$0xff]
    %v654 = vld [vmem:[#allocation2 + $0x90] sm:$0xff]
    %v655 = vld [vmem:[#allocation2 + $0x98] sm:$0xff]
    %v656 = vld [vmem:[#allocation2 + $0xa0] sm:$0xff]
    %v657 = vld [vmem:[#allocation2 + $0xa8] sm:$0xff]
    %v658 = vld [vmem:[#allocation2 + $0xb0] sm:$0xff]
    %v659 = vld [vmem:[#allocation2 + $0xb8] sm:$0xff]
    %v660 = vld [vmem:[#allocation2 + $0xc0] sm:$0xff]
    %v661 = vld [vmem:[#allocation2 + $0xc8] sm:$0xff]
    %v662 = vld [vmem:[#allocation2 + $0xd0] sm:$0xff]
    %v663 = vld [vmem:[#allocation2 + $0xd8] sm:$0xff]
    %v664 = vld [vmem:[#allocation2 + $0xe0] sm:$0xff]
    %v665 = vld [vmem:[#allocation2 + $0xe8] sm:$0xff]
    %v666 = vld [vmem:[#allocation2 + $0xf0] sm:$0xff]
    %v667 = vld [vmem:[#allocation2 + $0xf8] sm:$0xff]
    %v668 = vld [vmem:[%s2] sm:$0x1]
    %v670 = vlaneseq
    %v671 = vshrl.u32 %v670, 7
    %v672 = vsub.s32 0, %v671
    %v673 = vrot.slane %v668, %v672
    %v675 = vadd.f32 %v636, %v673
    %v676 = vadd.f32 %v637, %v673
    %v677 = vadd.f32 %v638, %v673
    %v678 = vadd.f32 %v639, %v673
    %v679 = vadd.f32 %v640, %v673
    %v680 = vadd.f32 %v641, %v673
    %v681 = vadd.f32 %v642, %v673
    %v682 = vadd.f32 %v643, %v673
    %v683 = vadd.f32 %v644, %v673
    %v684 = vadd.f32 %v645, %v673
    %v685 = vadd.f32 %v646, %v673
    %v686 = vadd.f32 %v647, %v673
    %v687 = vadd.f32 %v648, %v673
    %v688 = vadd.f32 %v649, %v673
    %v689 = vadd.f32 %v650, %v673
    %v690 = vadd.f32 %v651, %v673
    %v691 = vadd.f32 %v652, %v673
    %v692 = vadd.f32 %v653, %v673
    %v693 = vadd.f32 %v654, %v673
    %v694 = vadd.f32 %v655, %v673
    %v695 = vadd.f32 %v656, %v673
    %v696 = vadd.f32 %v657, %v673
    %v697 = vadd.f32 %v658, %v673
    %v698 = vadd.f32 %v659, %v673
    %v699 = vadd.f32 %v660, %v673
    %v700 = vadd.f32 %v661, %v673
    %v701 = vadd.f32 %v662, %v673
    %v702 = vadd.f32 %v663, %v673
    %v703 = vadd.f32 %v664, %v673
    %v704 = vadd.f32 %v665, %v673
    %v705 = vadd.f32 %v666, %v673
    %v706 = vadd.f32 %v667, %v673
    %v707 = vmax.f32 %v675, 0.0
    %v708 = vmax.f32 %v676, 0.0
    %v709 = vmax.f32 %v677, 0.0
    %v710 = vmax.f32 %v678, 0.0
    %v711 = vmax.f32 %v679, 0.0
    %v712 = vmax.f32 %v680, 0.0
    %v713 = vmax.f32 %v681, 0.0
    %v714 = vmax.f32 %v682, 0.0
    %v715 = vmax.f32 %v683, 0.0
    %v716 = vmax.f32 %v684, 0.0
    %v717 = vmax.f32 %v685, 0.0
    %v718 = vmax.f32 %v686, 0.0
    %v719 = vmax.f32 %v687, 0.0
    %v720 = vmax.f32 %v688, 0.0
    %v721 = vmax.f32 %v689, 0.0
    %v722 = vmax.f32 %v690, 0.0
    %v723 = vmax.f32 %v691, 0.0
    %v724 = vmax.f32 %v692, 0.0
    %v725 = vmax.f32 %v693, 0.0
    %v726 = vmax.f32 %v694, 0.0
    %v727 = vmax.f32 %v695, 0.0
    %v728 = vmax.f32 %v696, 0.0
    %v729 = vmax.f32 %v697, 0.0
    %v730 = vmax.f32 %v698, 0.0
    %v731 = vmax.f32 %v699, 0.0
    %v732 = vmax.f32 %v700, 0.0
    %v733 = vmax.f32 %v701, 0.0
    %v734 = vmax.f32 %v702, 0.0
    %v735 = vmax.f32 %v703, 0.0
    %v736 = vmax.f32 %v704, 0.0
    %v737 = vmax.f32 %v705, 0.0
    %v738 = vmax.f32 %v706, 0.0
    %v739 = vpack.c.bf16 %v708, %v707
    %v740 = vpack.c.bf16 %v710, %v709
    %v741 = vpack.c.bf16 %v712, %v711
    %v742 = vpack.c.bf16 %v714, %v713
    %v743 = vpack.c.bf16 %v716, %v715
    %v744 = vpack.c.bf16 %v718, %v717
    %v745 = vpack.c.bf16 %v720, %v719
    %v746 = vpack.c.bf16 %v722, %v721
    %v747 = vpack.c.bf16 %v724, %v723
    %v748 = vpack.c.bf16 %v726, %v725
    %v749 = vpack.c.bf16 %v728, %v727
    %v750 = vpack.c.bf16 %v730, %v729
    %v751 = vpack.c.bf16 %v732, %v731
    %v752 = vpack.c.bf16 %v734, %v733
    %v753 = vpack.c.bf16 %v736, %v735
    %v754 = vpack.c.bf16 %v738, %v737
    %755 = vst [vmem:[%s3] sm:$0xff] %v739
    %756 = vst [vmem:[%s3 + $0x8] sm:$0xff] %v740
    %757 = vst [vmem:[%s3 + $0x10] sm:$0xff] %v741
    %758 = vst [vmem:[%s3 + $0x18] sm:$0xff] %v742
    %759 = vst [vmem:[%s3 + $0x20] sm:$0xff] %v743
    %760 = vst [vmem:[%s3 + $0x28] sm:$0xff] %v744
    %761 = vst [vmem:[%s3 + $0x30] sm:$0xff] %v745
    %762 = vst [vmem:[%s3 + $0x38] sm:$0xff] %v746
    %763 = vst [vmem:[%s3 + $0x40] sm:$0xff] %v747
    %764 = vst [vmem:[%s3 + $0x48] sm:$0xff] %v748
    %765 = vst [vmem:[%s3 + $0x50] sm:$0xff] %v749
    %766 = vst [vmem:[%s3 + $0x58] sm:$0xff] %v750
    %767 = vst [vmem:[%s3 + $0x60] sm:$0xff] %v751
    %768 = vst [vmem:[%s3 + $0x68] sm:$0xff] %v752
    %769 = vst [vmem:[%s3 + $0x70] sm:$0xff] %v753
    %770 = vst [vmem:[%s3 + $0x78] sm:$0xff] %v754
  $region21: #{variational_gnn_encoder.2} parent=0 // pred_fallthru
    _
  // Predicated region
  $region22: #{variational_gnn_encoder.2} parent=0 // pred_check
    _
  $region23: #{variational_gnn_encoder.2} parent=0 // pred_check_branch
    %772 = sbr.rel (0) target = $region25
  $region24: #{variational_gnn_encoder.2} parent=0 // pred_region
    _
  $region25: #{variational_gnn_encoder.2} parent=0 // pred_fallthru
    _
  // Predicated region
  $region26: #{variational_gnn_encoder.2} parent=0 // pred_check
    _
  $region27: #{variational_gnn_encoder.2} parent=0 // pred_check_branch
    %774 = sbr.rel (0) target = $region29
  $region28: #{variational_gnn_encoder.2} parent=0 // pred_region
    _
  $region29: #{variational_gnn_encoder.2} parent=0 // pred_fallthru
    _

// kernel: variational_gnn_encoder.3
$region0: #{variational_gnn_encoder.3}
  #allocation0 [shape = 'u32[]', space=smem, size = 0x4, offset = 0x4, fixed_abs, tag = 'smem constant byte address 0x4 - core index']
  #allocation1 [shape = 'u32[144,128]{1,0:T(1,128)}', space=vmem, size = 0x12000, scoped, tag = 'internal scratch']
  #allocation2 [shape = 'f32[256,128]{1,0:T(8,128)}', space=vmem, size = 0x20000, scoped, tag = 'scratch operand']
  %s0 = inlined_call_operand.vmem [shape: bf16[256,256], index: 0, kind: input, shape index: {}]
  %s1 = inlined_call_operand.vmem [shape: bf16[256,128], index: 1, kind: input, shape index: {}]
  %s2 = inlined_call_operand.vmem [shape: f32[1,128], index: 2, kind: input, shape index: {}]
  %s3 = inlined_call_operand.vmem [shape: f32[256,128], index: 3, kind: output, shape index: {}]
  %s4 = sld [smem:[#allocation0]]
  $region30: #{variational_gnn_encoder.3} parent=0
    _
  %s6 = ssub.s32 1, %s4
  %s7 = scalar_select 0, %s6, %s4
  // Predicated region
  $region2: #{variational_gnn_encoder.3} parent=0 // pred_check
    _
  $region3: #{variational_gnn_encoder.3} parent=0 // pred_check_branch
    %9 = sbr.rel (0) target = $region5
  $region4: #{variational_gnn_encoder.3} parent=0 // pred_region
    _
  $region5: #{variational_gnn_encoder.3} parent=0 // pred_fallthru
    _
  // Predicated region
  $region6: #{variational_gnn_encoder.3} parent=0 // pred_check
    _
  $region7: #{variational_gnn_encoder.3} parent=0 // pred_check_branch
    %11 = sbr.rel (0) target = $region9
  $region8: #{variational_gnn_encoder.3} parent=0 // pred_region
    _
  $region9: #{variational_gnn_encoder.3} parent=0 // pred_fallthru
    _
  // Predicated region
  $region10: #{variational_gnn_encoder.3} parent=0 // pred_check
    _
  $region11: #{variational_gnn_encoder.3} parent=0 // pred_check_branch
    %13 = sbr.rel (0) target = $region13
  $region12: #{variational_gnn_encoder.3} parent=0 // pred_region
    _
  $region13: #{variational_gnn_encoder.3} parent=0 // pred_fallthru
    _
  %p15 = scmp.eq.s32.totalorder 0, 0
  // Predicated region
  $region14: #{variational_gnn_encoder.3} parent=0 // pred_check
    %p16 = pneg %p15
  $region15: #{variational_gnn_encoder.3} parent=0 // pred_check_branch
    %18 = sbr.rel (%p16) target = $region17
  $region16: #{variational_gnn_encoder.3} parent=0 // pred_region
    %19 = vst [vmem:[#allocation2] sm:$0xff] 0.0
    %20 = vst [vmem:[#allocation2 + $0x8] sm:$0xff] 0.0
    %21 = vst [vmem:[#allocation2 + $0x10] sm:$0xff] 0.0
    %22 = vst [vmem:[#allocation2 + $0x18] sm:$0xff] 0.0
    %23 = vst [vmem:[#allocation2 + $0x20] sm:$0xff] 0.0
    %24 = vst [vmem:[#allocation2 + $0x28] sm:$0xff] 0.0
    %25 = vst [vmem:[#allocation2 + $0x30] sm:$0xff] 0.0
    %26 = vst [vmem:[#allocation2 + $0x38] sm:$0xff] 0.0
    %27 = vst [vmem:[#allocation2 + $0x40] sm:$0xff] 0.0
    %28 = vst [vmem:[#allocation2 + $0x48] sm:$0xff] 0.0
    %29 = vst [vmem:[#allocation2 + $0x50] sm:$0xff] 0.0
    %30 = vst [vmem:[#allocation2 + $0x58] sm:$0xff] 0.0
    %31 = vst [vmem:[#allocation2 + $0x60] sm:$0xff] 0.0
    %32 = vst [vmem:[#allocation2 + $0x68] sm:$0xff] 0.0
    %33 = vst [vmem:[#allocation2 + $0x70] sm:$0xff] 0.0
    %34 = vst [vmem:[#allocation2 + $0x78] sm:$0xff] 0.0
    %35 = vst [vmem:[#allocation2 + $0x80] sm:$0xff] 0.0
    %36 = vst [vmem:[#allocation2 + $0x88] sm:$0xff] 0.0
    %37 = vst [vmem:[#allocation2 + $0x90] sm:$0xff] 0.0
    %38 = vst [vmem:[#allocation2 + $0x98] sm:$0xff] 0.0
    %39 = vst [vmem:[#allocation2 + $0xa0] sm:$0xff] 0.0
    %40 = vst [vmem:[#allocation2 + $0xa8] sm:$0xff] 0.0
    %41 = vst [vmem:[#allocation2 + $0xb0] sm:$0xff] 0.0
    %42 = vst [vmem:[#allocation2 + $0xb8] sm:$0xff] 0.0
    %43 = vst [vmem:[#allocation2 + $0xc0] sm:$0xff] 0.0
    %44 = vst [vmem:[#allocation2 + $0xc8] sm:$0xff] 0.0
    %45 = vst [vmem:[#allocation2 + $0xd0] sm:$0xff] 0.0
    %46 = vst [vmem:[#allocation2 + $0xd8] sm:$0xff] 0.0
    %47 = vst [vmem:[#allocation2 + $0xe0] sm:$0xff] 0.0
    %48 = vst [vmem:[#allocation2 + $0xe8] sm:$0xff] 0.0
    %49 = vst [vmem:[#allocation2 + $0xf0] sm:$0xff] 0.0
    %50 = vst [vmem:[#allocation2 + $0xf8] sm:$0xff] 0.0
  $region17: #{variational_gnn_encoder.3} parent=0 // pred_fallthru
    _
  %s51 = smul.u32 0, 256
  %s52 = sshra.s32 %s51, 3
  %s53 = sand.u32 %s51, 7
  %s54 = smul.addr %s52, 4
  %s55 = scalar_lea.vmem %s1, %s54
  %v56 = vld [vmem:[%s55] sm:$0xf]
  %v57 = vld [vmem:[%s55 + $0x4] sm:$0xf]
  %v58 = vld [vmem:[%s55 + $0x8] sm:$0xf]
  %v59 = vld [vmem:[%s55 + $0xc] sm:$0xf]
  %v60 = vld [vmem:[%s55 + $0x10] sm:$0xf]
  %v61 = vld [vmem:[%s55 + $0x14] sm:$0xf]
  %v62 = vld [vmem:[%s55 + $0x18] sm:$0xf]
  %v63 = vld [vmem:[%s55 + $0x1c] sm:$0xf]
  %v64 = vld [vmem:[%s55 + $0x20] sm:$0xf]
  %v65 = vld [vmem:[%s55 + $0x24] sm:$0xf]
  %v66 = vld [vmem:[%s55 + $0x28] sm:$0xf]
  %v67 = vld [vmem:[%s55 + $0x2c] sm:$0xf]
  %v68 = vld [vmem:[%s55 + $0x30] sm:$0xf]
  %v69 = vld [vmem:[%s55 + $0x34] sm:$0xf]
  %v70 = vld [vmem:[%s55 + $0x38] sm:$0xf]
  %v71 = vld [vmem:[%s55 + $0x3c] sm:$0xf]
  %v72 = vld [vmem:[%s55 + $0x40] sm:$0xf]
  %v73 = vld [vmem:[%s55 + $0x44] sm:$0xf]
  %v74 = vld [vmem:[%s55 + $0x48] sm:$0xf]
  %v75 = vld [vmem:[%s55 + $0x4c] sm:$0xf]
  %v76 = vld [vmem:[%s55 + $0x50] sm:$0xf]
  %v77 = vld [vmem:[%s55 + $0x54] sm:$0xf]
  %v78 = vld [vmem:[%s55 + $0x58] sm:$0xf]
  %v79 = vld [vmem:[%s55 + $0x5c] sm:$0xf]
  %v80 = vld [vmem:[%s55 + $0x60] sm:$0xf]
  %v81 = vld [vmem:[%s55 + $0x64] sm:$0xf]
  %v82 = vld [vmem:[%s55 + $0x68] sm:$0xf]
  %v83 = vld [vmem:[%s55 + $0x6c] sm:$0xf]
  %v84 = vld [vmem:[%s55 + $0x70] sm:$0xf]
  %v85 = vld [vmem:[%s55 + $0x74] sm:$0xf]
  %v86 = vld [vmem:[%s55 + $0x78] sm:$0xf]
  %v87 = vld [vmem:[%s55 + $0x7c] sm:$0xf]
  %v88 = vld [vmem:[#allocation2] sm:$0xff]
  %v89 = vld [vmem:[#allocation2 + $0x8] sm:$0xff]
  %v90 = vld [vmem:[#allocation2 + $0x10] sm:$0xff]
  %v91 = vld [vmem:[#allocation2 + $0x18] sm:$0xff]
  %v92 = vld [vmem:[#allocation2 + $0x20] sm:$0xff]
  %v93 = vld [vmem:[#allocation2 + $0x28] sm:$0xff]
  %v94 = vld [vmem:[#allocation2 + $0x30] sm:$0xff]
  %v95 = vld [vmem:[#allocation2 + $0x38] sm:$0xff]
  %v96 = vld [vmem:[#allocation2 + $0x40] sm:$0xff]
  %v97 = vld [vmem:[#allocation2 + $0x48] sm:$0xff]
  %v98 = vld [vmem:[#allocation2 + $0x50] sm:$0xff]
  %v99 = vld [vmem:[#allocation2 + $0x58] sm:$0xff]
  %v100 = vld [vmem:[#allocation2 + $0x60] sm:$0xff]
  %v101 = vld [vmem:[#allocation2 + $0x68] sm:$0xff]
  %v102 = vld [vmem:[#allocation2 + $0x70] sm:$0xff]
  %v103 = vld [vmem:[#allocation2 + $0x78] sm:$0xff]
  %v104 = vld [vmem:[#allocation2 + $0x80] sm:$0xff]
  %v105 = vld [vmem:[#allocation2 + $0x88] sm:$0xff]
  %v106 = vld [vmem:[#allocation2 + $0x90] sm:$0xff]
  %v107 = vld [vmem:[#allocation2 + $0x98] sm:$0xff]
  %v108 = vld [vmem:[#allocation2 + $0xa0] sm:$0xff]
  %v109 = vld [vmem:[#allocation2 + $0xa8] sm:$0xff]
  %v110 = vld [vmem:[#allocation2 + $0xb0] sm:$0xff]
  %v111 = vld [vmem:[#allocation2 + $0xb8] sm:$0xff]
  %v112 = vld [vmem:[#allocation2 + $0xc0] sm:$0xff]
  %v113 = vld [vmem:[#allocation2 + $0xc8] sm:$0xff]
  %v114 = vld [vmem:[#allocation2 + $0xd0] sm:$0xff]
  %v115 = vld [vmem:[#allocation2 + $0xd8] sm:$0xff]
  %v116 = vld [vmem:[#allocation2 + $0xe0] sm:$0xff]
  %v117 = vld [vmem:[#allocation2 + $0xe8] sm:$0xff]
  %v118 = vld [vmem:[#allocation2 + $0xf0] sm:$0xff]
  %v119 = vld [vmem:[#allocation2 + $0xf8] sm:$0xff]
  %v120 = vld [vmem:[%s0] sm:$0xff]
  %v121 = vld [vmem:[%s0 + $0x8] sm:$0xff]
  %v122 = vld [vmem:[%s0 + $0x10] sm:$0xff]
  %v123 = vld [vmem:[%s0 + $0x18] sm:$0xff]
  %v124 = vld [vmem:[%s0 + $0x20] sm:$0xff]
  %v125 = vld [vmem:[%s0 + $0x28] sm:$0xff]
  %v126 = vld [vmem:[%s0 + $0x30] sm:$0xff]
  %v127 = vld [vmem:[%s0 + $0x38] sm:$0xff]
  %v128 = vld [vmem:[%s0 + $0x40] sm:$0xff]
  %v129 = vld [vmem:[%s0 + $0x48] sm:$0xff]
  %v130 = vld [vmem:[%s0 + $0x50] sm:$0xff]
  %v131 = vld [vmem:[%s0 + $0x58] sm:$0xff]
  %v132 = vld [vmem:[%s0 + $0x60] sm:$0xff]
  %v133 = vld [vmem:[%s0 + $0x68] sm:$0xff]
  %v134 = vld [vmem:[%s0 + $0x70] sm:$0xff]
  %v135 = vld [vmem:[%s0 + $0x78] sm:$0xff]
  %v136 = vld [vmem:[%s0 + $0x80] sm:$0xff]
  %v137 = vld [vmem:[%s0 + $0x88] sm:$0xff]
  %v138 = vld [vmem:[%s0 + $0x90] sm:$0xff]
  %v139 = vld [vmem:[%s0 + $0x98] sm:$0xff]
  %v140 = vld [vmem:[%s0 + $0xa0] sm:$0xff]
  %v141 = vld [vmem:[%s0 + $0xa8] sm:$0xff]
  %v142 = vld [vmem:[%s0 + $0xb0] sm:$0xff]
  %v143 = vld [vmem:[%s0 + $0xb8] sm:$0xff]
  %v144 = vld [vmem:[%s0 + $0xc0] sm:$0xff]
  %v145 = vld [vmem:[%s0 + $0xc8] sm:$0xff]
  %v146 = vld [vmem:[%s0 + $0xd0] sm:$0xff]
  %v147 = vld [vmem:[%s0 + $0xd8] sm:$0xff]
  %v148 = vld [vmem:[%s0 + $0xe0] sm:$0xff]
  %v149 = vld [vmem:[%s0 + $0xe8] sm:$0xff]
  %v150 = vld [vmem:[%s0 + $0xf0] sm:$0xff]
  %v151 = vld [vmem:[%s0 + $0xf8] sm:$0xff]
  %v184 = vunpack.c.l.b16 %v120
  %v185 = vunpack.c.h.b16 %v120
  %v186 = vunpack.c.l.b16 %v121
  %v187 = vunpack.c.h.b16 %v121
  %v188 = vunpack.c.l.b16 %v122
  %v189 = vunpack.c.h.b16 %v122
  %v190 = vunpack.c.l.b16 %v123
  %v191 = vunpack.c.h.b16 %v123
  %v192 = vunpack.c.l.b16 %v124
  %v193 = vunpack.c.h.b16 %v124
  %v194 = vunpack.c.l.b16 %v125
  %v195 = vunpack.c.h.b16 %v125
  %v196 = vunpack.c.l.b16 %v126
  %v197 = vunpack.c.h.b16 %v126
  %v198 = vunpack.c.l.b16 %v127
  %v199 = vunpack.c.h.b16 %v127
  %v200 = vunpack.c.l.b16 %v128
  %v201 = vunpack.c.h.b16 %v128
  %v202 = vunpack.c.l.b16 %v129
  %v203 = vunpack.c.h.b16 %v129
  %v204 = vunpack.c.l.b16 %v130
  %v205 = vunpack.c.h.b16 %v130
  %v206 = vunpack.c.l.b16 %v131
  %v207 = vunpack.c.h.b16 %v131
  %v208 = vunpack.c.l.b16 %v132
  %v209 = vunpack.c.h.b16 %v132
  %v210 = vunpack.c.l.b16 %v133
  %v211 = vunpack.c.h.b16 %v133
  %v212 = vunpack.c.l.b16 %v134
  %v213 = vunpack.c.h.b16 %v134
  %v214 = vunpack.c.l.b16 %v135
  %v215 = vunpack.c.h.b16 %v135
  %v216 = vunpack.c.l.b16 %v136
  %v217 = vunpack.c.h.b16 %v136
  %v218 = vunpack.c.l.b16 %v137
  %v219 = vunpack.c.h.b16 %v137
  %v220 = vunpack.c.l.b16 %v138
  %v221 = vunpack.c.h.b16 %v138
  %v222 = vunpack.c.l.b16 %v139
  %v223 = vunpack.c.h.b16 %v139
  %v224 = vunpack.c.l.b16 %v140
  %v225 = vunpack.c.h.b16 %v140
  %v226 = vunpack.c.l.b16 %v141
  %v227 = vunpack.c.h.b16 %v141
  %v228 = vunpack.c.l.b16 %v142
  %v229 = vunpack.c.h.b16 %v142
  %v230 = vunpack.c.l.b16 %v143
  %v231 = vunpack.c.h.b16 %v143
  %v232 = vunpack.c.l.b16 %v144
  %v233 = vunpack.c.h.b16 %v144
  %v234 = vunpack.c.l.b16 %v145
  %v235 = vunpack.c.h.b16 %v145
  %v236 = vunpack.c.l.b16 %v146
  %v237 = vunpack.c.h.b16 %v146
  %v238 = vunpack.c.l.b16 %v147
  %v239 = vunpack.c.h.b16 %v147
  %v240 = vunpack.c.l.b16 %v148
  %v241 = vunpack.c.h.b16 %v148
  %v242 = vunpack.c.l.b16 %v149
  %v243 = vunpack.c.h.b16 %v149
  %v244 = vunpack.c.l.b16 %v150
  %v245 = vunpack.c.h.b16 %v150
  %v246 = vunpack.c.l.b16 %v151
  %v247 = vunpack.c.h.b16 %v151
  %v248 = vpack.c.b16 %v186, %v184
  %v249 = vpack.c.b16 %v187, %v185
  %v250 = vpack.c.b16 %v190, %v188
  %v251 = vpack.c.b16 %v191, %v189
  %v252 = vpack.c.b16 %v194, %v192
  %v253 = vpack.c.b16 %v195, %v193
  %v254 = vpack.c.b16 %v198, %v196
  %v255 = vpack.c.b16 %v199, %v197
  %v256 = vpack.c.b16 %v202, %v200
  %v257 = vpack.c.b16 %v203, %v201
  %v258 = vpack.c.b16 %v206, %v204
  %v259 = vpack.c.b16 %v207, %v205
  %v260 = vpack.c.b16 %v210, %v208
  %v261 = vpack.c.b16 %v211, %v209
  %v262 = vpack.c.b16 %v214, %v212
  %v263 = vpack.c.b16 %v215, %v213
  %v264 = vpack.c.b16 %v218, %v216
  %v265 = vpack.c.b16 %v219, %v217
  %v266 = vpack.c.b16 %v222, %v220
  %v267 = vpack.c.b16 %v223, %v221
  %v268 = vpack.c.b16 %v226, %v224
  %v269 = vpack.c.b16 %v227, %v225
  %v270 = vpack.c.b16 %v230, %v228
  %v271 = vpack.c.b16 %v231, %v229
  %v272 = vpack.c.b16 %v234, %v232
  %v273 = vpack.c.b16 %v235, %v233
  %v274 = vpack.c.b16 %v238, %v236
  %v275 = vpack.c.b16 %v239, %v237
  %v276 = vpack.c.b16 %v242, %v240
  %v277 = vpack.c.b16 %v243, %v241
  %v278 = vpack.c.b16 %v246, %v244
  %v279 = vpack.c.b16 %v247, %v245
  %v344 = vunpack.c.l.b16 %v56
  %v345 = vunpack.c.l.b16 %v57
  %v346 = vunpack.c.l.b16 %v58
  %v347 = vunpack.c.l.b16 %v59
  %v348 = vunpack.c.l.b16 %v60
  %v349 = vunpack.c.l.b16 %v61
  %v350 = vunpack.c.l.b16 %v62
  %v351 = vunpack.c.l.b16 %v63
  %v352 = vunpack.c.l.b16 %v64
  %v353 = vunpack.c.l.b16 %v65
  %v354 = vunpack.c.l.b16 %v66
  %v355 = vunpack.c.l.b16 %v67
  %v356 = vunpack.c.l.b16 %v68
  %v357 = vunpack.c.l.b16 %v69
  %v358 = vunpack.c.l.b16 %v70
  %v359 = vunpack.c.l.b16 %v71
  %v360 = vunpack.c.l.b16 %v72
  %v361 = vunpack.c.l.b16 %v73
  %v362 = vunpack.c.l.b16 %v74
  %v363 = vunpack.c.l.b16 %v75
  %v364 = vunpack.c.l.b16 %v76
  %v365 = vunpack.c.l.b16 %v77
  %v366 = vunpack.c.l.b16 %v78
  %v367 = vunpack.c.l.b16 %v79
  %v368 = vunpack.c.l.b16 %v80
  %v369 = vunpack.c.l.b16 %v81
  %v370 = vunpack.c.l.b16 %v82
  %v371 = vunpack.c.l.b16 %v83
  %v372 = vunpack.c.l.b16 %v84
  %v373 = vunpack.c.l.b16 %v85
  %v374 = vunpack.c.l.b16 %v86
  %v375 = vunpack.c.l.b16 %v87
  %v376 = vpack.c.b16 %v345, %v344
  %v377 = vpack.c.b16 %v347, %v346
  %v378 = vpack.c.b16 %v349, %v348
  %v379 = vpack.c.b16 %v351, %v350
  %v380 = vpack.c.b16 %v353, %v352
  %v381 = vpack.c.b16 %v355, %v354
  %v382 = vpack.c.b16 %v357, %v356
  %v383 = vpack.c.b16 %v359, %v358
  %v384 = vpack.c.b16 %v361, %v360
  %v385 = vpack.c.b16 %v363, %v362
  %v386 = vpack.c.b16 %v365, %v364
  %v387 = vpack.c.b16 %v367, %v366
  %v388 = vpack.c.b16 %v369, %v368
  %v389 = vpack.c.b16 %v371, %v370
  %v390 = vpack.c.b16 %v373, %v372
  %v391 = vpack.c.b16 %v375, %v374
  %408 = vmatprep.subr.bf16.mxu0 0
  %409 = vmatpush1.bf16.msra.mxu0 %v376
  %410 = vmatprep.subr.bf16.mxu0 0
  %411 = vmatpush1.bf16.msra.mxu0 %v377
  %412 = vmatprep.subr.bf16.mxu0 0
  %413 = vmatpush1.bf16.msra.mxu0 %v378
  %414 = vmatprep.subr.bf16.mxu0 0
  %415 = vmatpush1.bf16.msra.mxu0 %v379
  %416 = vmatprep.subr.bf16.mxu0 0
  %417 = vmatpush1.bf16.msra.mxu0 %v380
  %418 = vmatprep.subr.bf16.mxu0 0
  %419 = vmatpush1.bf16.msra.mxu0 %v381
  %420 = vmatprep.subr.bf16.mxu0 0
  %421 = vmatpush1.bf16.msra.mxu0 %v382
  %422 = vmatprep.subr.bf16.mxu0 0
  %423 = vmatpush1.bf16.msra.mxu0 %v383
  %424 = vmatprep.subr.bf16.mxu0 0
  %425 = vmatpush1.bf16.msra.mxu0 %v384
  %426 = vmatprep.subr.bf16.mxu0 0
  %427 = vmatpush1.bf16.msra.mxu0 %v385
  %428 = vmatprep.subr.bf16.mxu0 0
  %429 = vmatpush1.bf16.msra.mxu0 %v386
  %430 = vmatprep.subr.bf16.mxu0 0
  %431 = vmatpush1.bf16.msra.mxu0 %v387
  %432 = vmatprep.subr.bf16.mxu0 0
  %433 = vmatpush1.bf16.msra.mxu0 %v388
  %434 = vmatprep.subr.bf16.mxu0 0
  %435 = vmatpush1.bf16.msra.mxu0 %v389
  %436 = vmatprep.subr.bf16.mxu0 0
  %437 = vmatpush1.bf16.msra.mxu0 %v390
  %438 = vmatprep.subr.bf16.mxu0 0
  %439 = vmatpush1.bf16.msra.mxu0 %v391
  %440 = vmatprep.mubr.bf16.mxu0 %v249
  %441 = vmatmul.mubr.bf16.gmra.mrb[0].mxu0 %v248
  %v442 = vpop.f32.mrb[0].mxu0
  %v443 = vadd.f32 0.0, %v442
  %v444 = vpop.f32.mrb[0].mxu0
  %v445 = vpop.f32.mrb[0].mxu0
  %v446 = vadd.f32 0.0, %v445
  %v447 = vpop.f32.mrb[0].mxu0
  %448 = vmatprep.mubr.bf16.mxu0 %v251
  %449 = vmatmul.mubr.bf16.gmra.mrb[0].mxu0 %v250
  %v450 = vpop.f32.mrb[0].mxu0
  %v451 = vadd.f32 0.0, %v450
  %v452 = vpop.f32.mrb[0].mxu0
  %v453 = vpop.f32.mrb[0].mxu0
  %v454 = vadd.f32 0.0, %v453
  %v455 = vpop.f32.mrb[0].mxu0
  %456 = vmatprep.mubr.bf16.mxu0 %v253
  %457 = vmatmul.mubr.bf16.gmra.mrb[0].mxu0 %v252
  %v458 = vpop.f32.mrb[0].mxu0
  %v459 = vadd.f32 0.0, %v458
  %v460 = vpop.f32.mrb[0].mxu0
  %v461 = vpop.f32.mrb[0].mxu0
  %v462 = vadd.f32 0.0, %v461
  %v463 = vpop.f32.mrb[0].mxu0
  %464 = vmatprep.mubr.bf16.mxu0 %v255
  %465 = vmatmul.mubr.bf16.gmra.mrb[0].mxu0 %v254
  %v466 = vpop.f32.mrb[0].mxu0
  %v467 = vadd.f32 0.0, %v466
  %v468 = vpop.f32.mrb[0].mxu0
  %v469 = vpop.f32.mrb[0].mxu0
  %v470 = vadd.f32 0.0, %v469
  %v471 = vpop.f32.mrb[0].mxu0
  %472 = vmatprep.mubr.bf16.mxu0 %v257
  %473 = vmatmul.mubr.bf16.gmra.mrb[0].mxu0 %v256
  %v474 = vpop.f32.mrb[0].mxu0
  %v475 = vadd.f32 0.0, %v474
  %v476 = vpop.f32.mrb[0].mxu0
  %v477 = vpop.f32.mrb[0].mxu0
  %v478 = vadd.f32 0.0, %v477
  %v479 = vpop.f32.mrb[0].mxu0
  %480 = vmatprep.mubr.bf16.mxu0 %v259
  %481 = vmatmul.mubr.bf16.gmra.mrb[0].mxu0 %v258
  %v482 = vpop.f32.mrb[0].mxu0
  %v483 = vadd.f32 0.0, %v482
  %v484 = vpop.f32.mrb[0].mxu0
  %v485 = vpop.f32.mrb[0].mxu0
  %v486 = vadd.f32 0.0, %v485
  %v487 = vpop.f32.mrb[0].mxu0
  %488 = vmatprep.mubr.bf16.mxu0 %v261
  %489 = vmatmul.mubr.bf16.gmra.mrb[0].mxu0 %v260
  %v490 = vpop.f32.mrb[0].mxu0
  %v491 = vadd.f32 0.0, %v490
  %v492 = vpop.f32.mrb[0].mxu0
  %v493 = vpop.f32.mrb[0].mxu0
  %v494 = vadd.f32 0.0, %v493
  %v495 = vpop.f32.mrb[0].mxu0
  %496 = vmatprep.mubr.bf16.mxu0 %v263
  %497 = vmatmul.mubr.bf16.gmra.mrb[0].mxu0 %v262
  %v498 = vpop.f32.mrb[0].mxu0
  %v499 = vadd.f32 0.0, %v498
  %v500 = vpop.f32.mrb[0].mxu0
  %v501 = vpop.f32.mrb[0].mxu0
  %v502 = vadd.f32 0.0, %v501
  %v503 = vpop.f32.mrb[0].mxu0
  %504 = vmatprep.mubr.bf16.mxu0 %v265
  %505 = vmatmul.mubr.bf16.gmra.mrb[0].mxu0 %v264
  %v506 = vpop.f32.mrb[0].mxu0
  %v507 = vadd.f32 0.0, %v506
  %v508 = vpop.f32.mrb[0].mxu0
  %v509 = vpop.f32.mrb[0].mxu0
  %v510 = vadd.f32 0.0, %v509
  %v511 = vpop.f32.mrb[0].mxu0
  %512 = vmatprep.mubr.bf16.mxu0 %v267
  %513 = vmatmul.mubr.bf16.gmra.mrb[0].mxu0 %v266
  %v514 = vpop.f32.mrb[0].mxu0
  %v515 = vadd.f32 0.0, %v514
  %v516 = vpop.f32.mrb[0].mxu0
  %v517 = vpop.f32.mrb[0].mxu0
  %v518 = vadd.f32 0.0, %v517
  %v519 = vpop.f32.mrb[0].mxu0
  %520 = vmatprep.mubr.bf16.mxu0 %v269
  %521 = vmatmul.mubr.bf16.gmra.mrb[0].mxu0 %v268
  %v522 = vpop.f32.mrb[0].mxu0
  %v523 = vadd.f32 0.0, %v522
  %v524 = vpop.f32.mrb[0].mxu0
  %v525 = vpop.f32.mrb[0].mxu0
  %v526 = vadd.f32 0.0, %v525
  %v527 = vpop.f32.mrb[0].mxu0
  %528 = vmatprep.mubr.bf16.mxu0 %v271
  %529 = vmatmul.mubr.bf16.gmra.mrb[0].mxu0 %v270
  %v530 = vpop.f32.mrb[0].mxu0
  %v531 = vadd.f32 0.0, %v530
  %v532 = vpop.f32.mrb[0].mxu0
  %v533 = vpop.f32.mrb[0].mxu0
  %v534 = vadd.f32 0.0, %v533
  %v535 = vpop.f32.mrb[0].mxu0
  %536 = vmatprep.mubr.bf16.mxu0 %v273
  %537 = vmatmul.mubr.bf16.gmra.mrb[0].mxu0 %v272
  %v538 = vpop.f32.mrb[0].mxu0
  %v539 = vadd.f32 0.0, %v538
  %v540 = vpop.f32.mrb[0].mxu0
  %v541 = vpop.f32.mrb[0].mxu0
  %v542 = vadd.f32 0.0, %v541
  %v543 = vpop.f32.mrb[0].mxu0
  %544 = vmatprep.mubr.bf16.mxu0 %v275
  %545 = vmatmul.mubr.bf16.gmra.mrb[0].mxu0 %v274
  %v546 = vpop.f32.mrb[0].mxu0
  %v547 = vadd.f32 0.0, %v546
  %v548 = vpop.f32.mrb[0].mxu0
  %v549 = vpop.f32.mrb[0].mxu0
  %v550 = vadd.f32 0.0, %v549
  %v551 = vpop.f32.mrb[0].mxu0
  %552 = vmatprep.mubr.bf16.mxu0 %v277
  %553 = vmatmul.mubr.bf16.gmra.mrb[0].mxu0 %v276
  %v554 = vpop.f32.mrb[0].mxu0
  %v555 = vadd.f32 0.0, %v554
  %v556 = vpop.f32.mrb[0].mxu0
  %v557 = vpop.f32.mrb[0].mxu0
  %v558 = vadd.f32 0.0, %v557
  %v559 = vpop.f32.mrb[0].mxu0
  %560 = vmatprep.mubr.bf16.mxu0 %v279
  %561 = vmatmul.mubr.bf16.gmra.mrb[0].mxu0 %v278
  %v562 = vpop.f32.mrb[0].mxu0
  %v563 = vadd.f32 0.0, %v562
  %v564 = vpop.f32.mrb[0].mxu0
  %v565 = vpop.f32.mrb[0].mxu0
  %v566 = vadd.f32 0.0, %v565
  %v567 = vpop.f32.mrb[0].mxu0
  %568 = vdwg.mxu0
  %v569 = vadd.f32 %v88, %v443
  %v570 = vadd.f32 %v89, %v446
  %v571 = vadd.f32 %v90, %v451
  %v572 = vadd.f32 %v91, %v454
  %v573 = vadd.f32 %v92, %v459
  %v574 = vadd.f32 %v93, %v462
  %v575 = vadd.f32 %v94, %v467
  %v576 = vadd.f32 %v95, %v470
  %v577 = vadd.f32 %v96, %v475
  %v578 = vadd.f32 %v97, %v478
  %v579 = vadd.f32 %v98, %v483
  %v580 = vadd.f32 %v99, %v486
  %v581 = vadd.f32 %v100, %v491
  %v582 = vadd.f32 %v101, %v494
  %v583 = vadd.f32 %v102, %v499
  %v584 = vadd.f32 %v103, %v502
  %v585 = vadd.f32 %v104, %v507
  %v586 = vadd.f32 %v105, %v510
  %v587 = vadd.f32 %v106, %v515
  %v588 = vadd.f32 %v107, %v518
  %v589 = vadd.f32 %v108, %v523
  %v590 = vadd.f32 %v109, %v526
  %v591 = vadd.f32 %v110, %v531
  %v592 = vadd.f32 %v111, %v534
  %v593 = vadd.f32 %v112, %v539
  %v594 = vadd.f32 %v113, %v542
  %v595 = vadd.f32 %v114, %v547
  %v596 = vadd.f32 %v115, %v550
  %v597 = vadd.f32 %v116, %v555
  %v598 = vadd.f32 %v117, %v558
  %v599 = vadd.f32 %v118, %v563
  %v600 = vadd.f32 %v119, %v566
  %601 = vst [vmem:[#allocation2] sm:$0xff] %v569
  %602 = vst [vmem:[#allocation2 + $0x8] sm:$0xff] %v570
  %603 = vst [vmem:[#allocation2 + $0x10] sm:$0xff] %v571
  %604 = vst [vmem:[#allocation2 + $0x18] sm:$0xff] %v572
  %605 = vst [vmem:[#allocation2 + $0x20] sm:$0xff] %v573
  %606 = vst [vmem:[#allocation2 + $0x28] sm:$0xff] %v574
  %607 = vst [vmem:[#allocation2 + $0x30] sm:$0xff] %v575
  %608 = vst [vmem:[#allocation2 + $0x38] sm:$0xff] %v576
  %609 = vst [vmem:[#allocation2 + $0x40] sm:$0xff] %v577
  %610 = vst [vmem:[#allocation2 + $0x48] sm:$0xff] %v578
  %611 = vst [vmem:[#allocation2 + $0x50] sm:$0xff] %v579
  %612 = vst [vmem:[#allocation2 + $0x58] sm:$0xff] %v580
  %613 = vst [vmem:[#allocation2 + $0x60] sm:$0xff] %v581
  %614 = vst [vmem:[#allocation2 + $0x68] sm:$0xff] %v582
  %615 = vst [vmem:[#allocation2 + $0x70] sm:$0xff] %v583
  %616 = vst [vmem:[#allocation2 + $0x78] sm:$0xff] %v584
  %617 = vst [vmem:[#allocation2 + $0x80] sm:$0xff] %v585
  %618 = vst [vmem:[#allocation2 + $0x88] sm:$0xff] %v586
  %619 = vst [vmem:[#allocation2 + $0x90] sm:$0xff] %v587
  %620 = vst [vmem:[#allocation2 + $0x98] sm:$0xff] %v588
  %621 = vst [vmem:[#allocation2 + $0xa0] sm:$0xff] %v589
  %622 = vst [vmem:[#allocation2 + $0xa8] sm:$0xff] %v590
  %623 = vst [vmem:[#allocation2 + $0xb0] sm:$0xff] %v591
  %624 = vst [vmem:[#allocation2 + $0xb8] sm:$0xff] %v592
  %625 = vst [vmem:[#allocation2 + $0xc0] sm:$0xff] %v593
  %626 = vst [vmem:[#allocation2 + $0xc8] sm:$0xff] %v594
  %627 = vst [vmem:[#allocation2 + $0xd0] sm:$0xff] %v595
  %628 = vst [vmem:[#allocation2 + $0xd8] sm:$0xff] %v596
  %629 = vst [vmem:[#allocation2 + $0xe0] sm:$0xff] %v597
  %630 = vst [vmem:[#allocation2 + $0xe8] sm:$0xff] %v598
  %631 = vst [vmem:[#allocation2 + $0xf0] sm:$0xff] %v599
  %632 = vst [vmem:[#allocation2 + $0xf8] sm:$0xff] %v600
  // Predicated region
  $region18: #{variational_gnn_encoder.3} parent=0 // pred_check
    %p633 = pneg %p15
  $region19: #{variational_gnn_encoder.3} parent=0 // pred_check_branch
    %635 = sbr.rel (%p633) target = $region21
  $region20: #{variational_gnn_encoder.3} parent=0 // pred_region
    %v636 = vld [vmem:[#allocation2] sm:$0xff]
    %v637 = vld [vmem:[#allocation2 + $0x8] sm:$0xff]
    %v638 = vld [vmem:[#allocation2 + $0x10] sm:$0xff]
    %v639 = vld [vmem:[#allocation2 + $0x18] sm:$0xff]
    %v640 = vld [vmem:[#allocation2 + $0x20] sm:$0xff]
    %v641 = vld [vmem:[#allocation2 + $0x28] sm:$0xff]
    %v642 = vld [vmem:[#allocation2 + $0x30] sm:$0xff]
    %v643 = vld [vmem:[#allocation2 + $0x38] sm:$0xff]
    %v644 = vld [vmem:[#allocation2 + $0x40] sm:$0xff]
    %v645 = vld [vmem:[#allocation2 + $0x48] sm:$0xff]
    %v646 = vld [vmem:[#allocation2 + $0x50] sm:$0xff]
    %v647 = vld [vmem:[#allocation2 + $0x58] sm:$0xff]
    %v648 = vld [vmem:[#allocation2 + $0x60] sm:$0xff]
    %v649 = vld [vmem:[#allocation2 + $0x68] sm:$0xff]
    %v650 = vld [vmem:[#allocation2 + $0x70] sm:$0xff]
    %v651 = vld [vmem:[#allocation2 + $0x78] sm:$0xff]
    %v652 = vld [vmem:[#allocation2 + $0x80] sm:$0xff]
    %v653 = vld [vmem:[#allocation2 + $0x88] sm:$0xff]
    %v654 = vld [vmem:[#allocation2 + $0x90] sm:$0xff]
    %v655 = vld [vmem:[#allocation2 + $0x98] sm:$0xff]
    %v656 = vld [vmem:[#allocation2 + $0xa0] sm:$0xff]
    %v657 = vld [vmem:[#allocation2 + $0xa8] sm:$0xff]
    %v658 = vld [vmem:[#allocation2 + $0xb0] sm:$0xff]
    %v659 = vld [vmem:[#allocation2 + $0xb8] sm:$0xff]
    %v660 = vld [vmem:[#allocation2 + $0xc0] sm:$0xff]
    %v661 = vld [vmem:[#allocation2 + $0xc8] sm:$0xff]
    %v662 = vld [vmem:[#allocation2 + $0xd0] sm:$0xff]
    %v663 = vld [vmem:[#allocation2 + $0xd8] sm:$0xff]
    %v664 = vld [vmem:[#allocation2 + $0xe0] sm:$0xff]
    %v665 = vld [vmem:[#allocation2 + $0xe8] sm:$0xff]
    %v666 = vld [vmem:[#allocation2 + $0xf0] sm:$0xff]
    %v667 = vld [vmem:[#allocation2 + $0xf8] sm:$0xff]
    %v668 = vld [vmem:[%s2] sm:$0x1]
    %v670 = vlaneseq
    %v671 = vshrl.u32 %v670, 7
    %v672 = vsub.s32 0, %v671
    %v673 = vrot.slane %v668, %v672
    %v675 = vadd.f32 %v636, %v673
    %v676 = vadd.f32 %v637, %v673
    %v677 = vadd.f32 %v638, %v673
    %v678 = vadd.f32 %v639, %v673
    %v679 = vadd.f32 %v640, %v673
    %v680 = vadd.f32 %v641, %v673
    %v681 = vadd.f32 %v642, %v673
    %v682 = vadd.f32 %v643, %v673
    %v683 = vadd.f32 %v644, %v673
    %v684 = vadd.f32 %v645, %v673
    %v685 = vadd.f32 %v646, %v673
    %v686 = vadd.f32 %v647, %v673
    %v687 = vadd.f32 %v648, %v673
    %v688 = vadd.f32 %v649, %v673
    %v689 = vadd.f32 %v650, %v673
    %v690 = vadd.f32 %v651, %v673
    %v691 = vadd.f32 %v652, %v673
    %v692 = vadd.f32 %v653, %v673
    %v693 = vadd.f32 %v654, %v673
    %v694 = vadd.f32 %v655, %v673
    %v695 = vadd.f32 %v656, %v673
    %v696 = vadd.f32 %v657, %v673
    %v697 = vadd.f32 %v658, %v673
    %v698 = vadd.f32 %v659, %v673
    %v699 = vadd.f32 %v660, %v673
    %v700 = vadd.f32 %v661, %v673
    %v701 = vadd.f32 %v662, %v673
    %v702 = vadd.f32 %v663, %v673
    %v703 = vadd.f32 %v664, %v673
    %v704 = vadd.f32 %v665, %v673
    %v705 = vadd.f32 %v666, %v673
    %v706 = vadd.f32 %v667, %v673
    %707 = vst [vmem:[%s3] sm:$0xff] %v675
    %708 = vst [vmem:[%s3 + $0x8] sm:$0xff] %v676
    %709 = vst [vmem:[%s3 + $0x10] sm:$0xff] %v677
    %710 = vst [vmem:[%s3 + $0x18] sm:$0xff] %v678
    %711 = vst [vmem:[%s3 + $0x20] sm:$0xff] %v679
    %712 = vst [vmem:[%s3 + $0x28] sm:$0xff] %v680
    %713 = vst [vmem:[%s3 + $0x30] sm:$0xff] %v681
    %714 = vst [vmem:[%s3 + $0x38] sm:$0xff] %v682
    %715 = vst [vmem:[%s3 + $0x40] sm:$0xff] %v683
    %716 = vst [vmem:[%s3 + $0x48] sm:$0xff] %v684
    %717 = vst [vmem:[%s3 + $0x50] sm:$0xff] %v685
    %718 = vst [vmem:[%s3 + $0x58] sm:$0xff] %v686
    %719 = vst [vmem:[%s3 + $0x60] sm:$0xff] %v687
    %720 = vst [vmem:[%s3 + $0x68] sm:$0xff] %v688
    %721 = vst [vmem:[%s3 + $0x70] sm:$0xff] %v689
    %722 = vst [vmem:[%s3 + $0x78] sm:$0xff] %v690
    %723 = vst [vmem:[%s3 + $0x80] sm:$0xff] %v691
    %724 = vst [vmem:[%s3 + $0x88] sm:$0xff] %v692
    %725 = vst [vmem:[%s3 + $0x90] sm:$0xff] %v693
    %726 = vst [vmem:[%s3 + $0x98] sm:$0xff] %v694
    %727 = vst [vmem:[%s3 + $0xa0] sm:$0xff] %v695
    %728 = vst [vmem:[%s3 + $0xa8] sm:$0xff] %v696
    %729 = vst [vmem:[%s3 + $0xb0] sm:$0xff] %v697
    %730 = vst [vmem:[%s3 + $0xb8] sm:$0xff] %v698
    %731 = vst [vmem:[%s3 + $0xc0] sm:$0xff] %v699
    %732 = vst [vmem:[%s3 + $0xc8] sm:$0xff] %v700
    %733 = vst [vmem:[%s3 + $0xd0] sm:$0xff] %v701
    %734 = vst [vmem:[%s3 + $0xd8] sm:$0xff] %v702
    %735 = vst [vmem:[%s3 + $0xe0] sm:$0xff] %v703
    %736 = vst [vmem:[%s3 + $0xe8] sm:$0xff] %v704
    %737 = vst [vmem:[%s3 + $0xf0] sm:$0xff] %v705
    %738 = vst [vmem:[%s3 + $0xf8] sm:$0xff] %v706
  $region21: #{variational_gnn_encoder.3} parent=0 // pred_fallthru
    _
  // Predicated region
  $region22: #{variational_gnn_encoder.3} parent=0 // pred_check
    _
  $region23: #{variational_gnn_encoder.3} parent=0 // pred_check_branch
    %740 = sbr.rel (0) target = $region25
  $region24: #{variational_gnn_encoder.3} parent=0 // pred_region
    _
  $region25: #{variational_gnn_encoder.3} parent=0 // pred_fallthru
    _
  // Predicated region
  $region26: #{variational_gnn_encoder.3} parent=0 // pred_check
    _
  $region27: #{variational_gnn_encoder.3} parent=0 // pred_check_branch
    %742 = sbr.rel (0) target = $region29
  $region28: #{variational_gnn_encoder.3} parent=0 // pred_region
    _
  $region29: #{variational_gnn_encoder.3} parent=0 // pred_fallthru
    _

</llo_original>
